<compile_context>
chip_gen: v7x
topology: tpu7x:2x2x1
jax: 0.10.0
libtpu: 0.0.40
codegen_flags: <defaults>
</compile_context>

<pallas_src>
import functools

import jax
import jax.numpy as jnp
from jax.experimental import pallas as pl
from jax.experimental.pallas import tpu as pltpu

_LANE = 128              # lane width: pad the action_dim output to this
_MAX_TILE_B = 512        # max batch tile (review: 512 ~ 85% of HBM roofline)
_SINGLE_BLOCK_MAX_B = 256  # batches above this get >= 2 tiles (v7x megacore)


def _round_up(x, m):
    return ((x + m - 1) // m) * m


def _mlp_kernel(obs_ref, goal_ref, w1o_ref, w1g_ref, b1_ref,
                w2_ref, b2_ref, w3_ref, b3_ref, o_ref):
    """Linear->ReLU->Linear->ReLU->Linear, concat fused via split W1.

    Matmul operands in bf16 (MXU-native, halves HBM weight traffic),
    accumulation and all elementwise work (bias add, ReLU) in f32.
    """
    obs = obs_ref[...].astype(jnp.bfloat16)
    goal = goal_ref[...].astype(jnp.bfloat16)

    h1 = jnp.dot(obs, w1o_ref[...], preferred_element_type=jnp.float32)
    h1 = h1 + jnp.dot(goal, w1g_ref[...], preferred_element_type=jnp.float32)
    h1 = jnp.maximum(h1 + b1_ref[...], 0.0)

    h2 = jnp.dot(h1.astype(jnp.bfloat16), w2_ref[...],
                 preferred_element_type=jnp.float32) + b2_ref[...]
    h2 = jnp.maximum(h2, 0.0)

    out = jnp.dot(h2.astype(jnp.bfloat16), w3_ref[...],
                  preferred_element_type=jnp.float32) + b3_ref[...]
    o_ref[...] = out.astype(o_ref.dtype)


@functools.partial(jax.jit, static_argnames=("action_dim",))
def policy_forward(obs, goal, kernel_params, *, action_dim):
    """Pallas implementation of ContinuousGaussianFixedVarianceGoalPolicy.forward.

    obs:  (B, obs_dim)  float32
    goal: (B, goal_dim) float32
    kernel_params: output of prepare_kernel_params()
    returns action means: (B, action_dim) float32
    """
    w1o, w1g, b1, w2, b2, w3p, b3p = kernel_params

    b = obs.shape[0]
    obs = obs.reshape(b, -1).astype(jnp.float32)
    goal = goal.reshape(b, -1).astype(jnp.float32)
    obs_dim, goal_dim = obs.shape[1], goal.shape[1]
    h1_dim, h2_dim = w1o.shape[1], w2.shape[1]
    out_pad = w3p.shape[1]

    # Batch tiling:
    #  * small B: one full-extent block (inference regime, grid = (1,)).
    #  * large B: >= 2 tiles (so v7x megacore shards the batch), tile capped at
    #    _MAX_TILE_B and rounded to a multiple of 16 (bf16-friendly sublanes).
    if b <= _SINGLE_BLOCK_MAX_B:
        tile_b, b_pad = b, b
    else:
        half = _round_up(-(-b // 2), 16)
        tile_b = min(_MAX_TILE_B, half)
        b_pad = _round_up(b, tile_b)
    if b_pad != b:
        obs = jnp.pad(obs, ((0, b_pad - b), (0, 0)))
        goal = jnp.pad(goal, ((0, b_pad - b), (0, 0)))

    batch_map = lambda i: (i, 0)
    resident = lambda i: (0, 0)  # weights/biases stay resident across batch tiles
    # Resident blocks have a constant index map -> single-buffer them.
    single_buf = pl.Buffered(1)

    out = pl.pallas_call(
        _mlp_kernel,
        # bf16 output halves the (lane-padded) writeback + wrapper re-read.
        out_shape=jax.ShapeDtypeStruct((b_pad, out_pad), jnp.bfloat16),
        grid=(b_pad // tile_b,),
        in_specs=[
            pl.BlockSpec((tile_b, obs_dim), batch_map),
            pl.BlockSpec((tile_b, goal_dim), batch_map),
            pl.BlockSpec((obs_dim, h1_dim), resident, pipeline_mode=single_buf),
            pl.BlockSpec((goal_dim, h1_dim), resident, pipeline_mode=single_buf),
            pl.BlockSpec((1, h1_dim), resident, pipeline_mode=single_buf),
            pl.BlockSpec((h1_dim, h2_dim), resident, pipeline_mode=single_buf),
            pl.BlockSpec((1, h2_dim), resident, pipeline_mode=single_buf),
            pl.BlockSpec((h2_dim, out_pad), resident, pipeline_mode=single_buf),
            pl.BlockSpec((1, out_pad), resident, pipeline_mode=single_buf),
        ],
        out_specs=pl.BlockSpec((tile_b, out_pad), batch_map),
        compiler_params=pltpu.CompilerParams(
            dimension_semantics=("parallel",),
            vmem_limit_bytes=32 << 20,
        ),
    )(obs, goal, w1o, w1g, b1, w2, b2, w3p, b3p)

    # NOTE: a packed (b_pad//32, 128) output layout would cut writeback another
    # ~16x at large B, but requires the consumer to accept the packed slab.
    return out[:b, :action_dim].astype(jnp.float32)


def prepare_kernel_params(params, obs_dim):
    """Convert logical f32 params -> kernel layout.

    * W1 split along input dim into obs / goal halves (fuses the concat).
    * Weights cast to bf16 (biases stay f32).
    * Layer-3 weight/bias zero-padded on the output dim to a multiple of 128.
    """
    w1, b1, w2, b2, w3, b3 = params
    w1o = w1[:obs_dim].astype(jnp.bfloat16)
    w1g = w1[obs_dim:].astype(jnp.bfloat16)
    h2_dim, action_dim = w3.shape
    out_pad = _round_up(action_dim, _LANE)
    w3p = jnp.zeros((h2_dim, out_pad), jnp.bfloat16)
    w3p = w3p.at[:, :action_dim].set(w3.astype(jnp.bfloat16))
    b3p = jnp.zeros((1, out_pad), jnp.float32)
    b3p = b3p.at[:, :action_dim].set(b3.astype(jnp.float32))
    return (w1o, w1g, b1.astype(jnp.float32),
            w2.astype(jnp.bfloat16), b2.astype(jnp.float32), w3p, b3p)


def init_params(key, dim_in, layers, dim_out):
    """Deterministic init mimicking torch.nn.Linear default (uniform +/- 1/sqrt(fan_in))."""
    params = []
    dims = [dim_in] + list(layers) + [dim_out]
    for i in range(len(dims) - 1):
        fan_in, fan_out = dims[i], dims[i + 1]
        key, kw, kb = jax.random.split(key, 3)
        bound = 1.0 / jnp.sqrt(float(fan_in))
        w = jax.random.uniform(kw, (fan_in, fan_out), jnp.float32, -bound, bound)
        bvec = jax.random.uniform(kb, (1, fan_out), jnp.float32, -bound, bound)
        params.extend([w, bvec])
    return tuple(params)


def reference_forward_bf16(obs, goal, params):
    """Pure-JAX reference using the same bf16-rounded matmul operands and a
    bf16-rounded final store, matching the kernel's numerics."""
    bf = lambda a: a.astype(jnp.bfloat16).astype(jnp.float32)
    b = obs.shape[0]
    x = jnp.concatenate((obs.reshape(b, -1), goal.reshape(b, -1)), axis=1)
    w1, b1, w2, b2, w3, b3 = params
    h1 = jnp.maximum(bf(x) @ bf(w1) + b1, 0.0)
    h2 = jnp.maximum(bf(h1) @ bf(w2) + b2, 0.0)
    out = bf(h2) @ bf(w3) + b3
    return out.astype(jnp.bfloat16).astype(jnp.float32)


def reference_forward_f32(obs, goal, params):
    """Full-precision reference (semantics check, looser tolerance vs bf16 weights)."""
    b = obs.shape[0]
    x = jnp.concatenate((obs.reshape(b, -1), goal.reshape(b, -1)), axis=1)
    w1, b1, w2, b2, w3, b3 = params
    h1 = jnp.maximum(x @ w1 + b1, 0.0)
    h2 = jnp.maximum(h1 @ w2 + b2, 0.0)
    return h2 @ w3 + b3


if __name__ == "__main__":
    key = jax.random.PRNGKey(0)

    # Small env-like shapes: obs_dim=16, goal_dim=16, action_dim=4, batch=2.
    batch, obs_dim, goal_dim, action_dim = 2, 16, 16, 4
    layers = [512, 512]  # StateGoalNetwork default

    k_obs, k_goal, k_params, k_big = jax.random.split(key, 4)
    obs = jax.random.normal(k_obs, (batch, obs_dim), jnp.float32)
    goal = jax.random.normal(k_goal, (batch, goal_dim), jnp.float32)
    params = init_params(k_params, obs_dim + goal_dim, layers, action_dim)
    kparams = prepare_kernel_params(params, obs_dim)

    # --- small-batch (inference) path: single block, grid=(1,) ---
    means = policy_forward(obs, goal, kparams, action_dim=action_dim)
    jax.block_until_ready(means)

    ref_bf16 = reference_forward_bf16(obs, goal, params)
    ref_f32 = reference_forward_f32(obs, goal, params)
    assert means.shape == (batch, action_dim)
    assert jnp.allclose(means, ref_bf16, atol=1e-2, rtol=1e-2)
    assert jnp.allclose(means, ref_f32, atol=5e-2, rtol=5e-2)

    # --- large-batch path: exercises batch tiling, padding, and the
    #     "parallel" 2-step grid (both TensorCores on v7x) ---
    big_b = 520  # non-multiple of the tile -> exercises batch padding too
    kb_obs, kb_goal = jax.random.split(k_big)
    obs_b = jax.random.normal(kb_obs, (big_b, obs_dim), jnp.float32)
    goal_b = jax.random.normal(kb_goal, (big_b, goal_dim), jnp.float32)
    means_b = policy_forward(obs_b, goal_b, kparams, action_dim=action_dim)
    jax.block_until_ready(means_b)

    ref_b = reference_forward_bf16(obs_b, goal_b, params)
    assert means_b.shape == (big_b, action_dim)
    assert jnp.allclose(means_b, ref_b, atol=1e-2, rtol=1e-2)

    print("KERNEL_OK")
</pallas_src>

<mosaic_0001>
module attributes {stable_mosaic.version = 11 : i64} {
  func.func @_mlp_kernel(%arg0: i32, %arg1: memref<2x16xf32, #tpu.memory_space<vmem>>, %arg2: memref<2x16xf32, #tpu.memory_space<vmem>>, %arg3: memref<16x512xbf16, #tpu.memory_space<vmem>>, %arg4: memref<16x512xbf16, #tpu.memory_space<vmem>>, %arg5: memref<1x512xf32, #tpu.memory_space<vmem>>, %arg6: memref<512x512xbf16, #tpu.memory_space<vmem>>, %arg7: memref<1x512xf32, #tpu.memory_space<vmem>>, %arg8: memref<512x128xbf16, #tpu.memory_space<vmem>>, %arg9: memref<1x128xf32, #tpu.memory_space<vmem>>, %arg10: memref<2x128xbf16, #tpu.memory_space<vmem>>) attributes {dimension_semantics = [#tpu.dimension_semantics<parallel>], iteration_bounds = array<i64: 1>, scalar_prefetch = 0 : i64, scratch_operands = 0 : i64, tpu.core_type = #tpu.core_type<tc>, window_params = [{transform_indices = @transform_0, window_bounds = array<i64: 2, 16>}, {transform_indices = @transform_1, window_bounds = array<i64: 2, 16>}, {pipeline_mode = #tpu.pipeline_mode<synchronous>, transform_indices = @transform_2, window_bounds = array<i64: 16, 512>}, {pipeline_mode = #tpu.pipeline_mode<synchronous>, transform_indices = @transform_3, window_bounds = array<i64: 16, 512>}, {pipeline_mode = #tpu.pipeline_mode<synchronous>, transform_indices = @transform_4, window_bounds = array<i64: 1, 512>}, {pipeline_mode = #tpu.pipeline_mode<synchronous>, transform_indices = @transform_5, window_bounds = array<i64: 512, 512>}, {pipeline_mode = #tpu.pipeline_mode<synchronous>, transform_indices = @transform_6, window_bounds = array<i64: 1, 512>}, {pipeline_mode = #tpu.pipeline_mode<synchronous>, transform_indices = @transform_7, window_bounds = array<i64: 512, 128>}, {pipeline_mode = #tpu.pipeline_mode<synchronous>, transform_indices = @transform_8, window_bounds = array<i64: 1, 128>}, {transform_indices = @transform_9, window_bounds = array<i64: 2, 128>}]} {
    %c0 = arith.constant 0 : index
    %c0_0 = arith.constant 0 : index
    %0 = vector.load %arg1[%c0, %c0_0] : memref<2x16xf32, #tpu.memory_space<vmem>>, vector<2x16xf32>
    %1 = arith.truncf %0 : vector<2x16xf32> to vector<2x16xbf16>
    %c0_1 = arith.constant 0 : index
    %c0_2 = arith.constant 0 : index
    %2 = vector.load %arg2[%c0_1, %c0_2] : memref<2x16xf32, #tpu.memory_space<vmem>>, vector<2x16xf32>
    %3 = arith.truncf %2 : vector<2x16xf32> to vector<2x16xbf16>
    %c0_3 = arith.constant 0 : index
    %c0_4 = arith.constant 0 : index
    %4 = vector.load %arg3[%c0_3, %c0_4] : memref<16x512xbf16, #tpu.memory_space<vmem>>, vector<16x512xbf16>
    %cst = arith.constant dense<0.000000e+00> : vector<2x512xf32>
    %5 = tpu.matmul %1, %4, %cst {dimension_numbers = #tpu.dot_dimension_numbers<[1], [0], [0], [1], [0, 0, 1, 1], [], []>} : vector<2x16xbf16>, vector<16x512xbf16>, vector<2x512xf32> -> vector<2x512xf32>
    %c0_5 = arith.constant 0 : index
    %c0_6 = arith.constant 0 : index
    %6 = vector.load %arg4[%c0_5, %c0_6] : memref<16x512xbf16, #tpu.memory_space<vmem>>, vector<16x512xbf16>
    %cst_7 = arith.constant dense<0.000000e+00> : vector<2x512xf32>
    %7 = tpu.matmul %3, %6, %cst_7 {dimension_numbers = #tpu.dot_dimension_numbers<[1], [0], [0], [1], [0, 0, 1, 1], [], []>} : vector<2x16xbf16>, vector<16x512xbf16>, vector<2x512xf32> -> vector<2x512xf32>
    %8 = arith.addf %5, %7 : vector<2x512xf32>
    %c0_8 = arith.constant 0 : index
    %c0_9 = arith.constant 0 : index
    %9 = vector.load %arg5[%c0_8, %c0_9] : memref<1x512xf32, #tpu.memory_space<vmem>>, vector<1x512xf32>
    %10 = vector.broadcast %9 : vector<1x512xf32> to vector<2x512xf32>
    %11 = arith.addf %8, %10 : vector<2x512xf32>
    %cst_10 = arith.constant 0.000000e+00 : f32
    %12 = vector.broadcast %cst_10 : f32 to vector<2x512xf32>
    %13 = arith.maximumf %11, %12 : vector<2x512xf32>
    %14 = arith.truncf %13 : vector<2x512xf32> to vector<2x512xbf16>
    %c0_11 = arith.constant 0 : index
    %c0_12 = arith.constant 0 : index
    %15 = vector.load %arg6[%c0_11, %c0_12] : memref<512x512xbf16, #tpu.memory_space<vmem>>, vector<512x512xbf16>
    %cst_13 = arith.constant dense<0.000000e+00> : vector<2x512xf32>
    %16 = tpu.matmul %14, %15, %cst_13 {dimension_numbers = #tpu.dot_dimension_numbers<[1], [0], [0], [1], [0, 0, 1, 1], [], []>} : vector<2x512xbf16>, vector<512x512xbf16>, vector<2x512xf32> -> vector<2x512xf32>
    %c0_14 = arith.constant 0 : index
    %c0_15 = arith.constant 0 : index
    %17 = vector.load %arg7[%c0_14, %c0_15] : memref<1x512xf32, #tpu.memory_space<vmem>>, vector<1x512xf32>
    %18 = vector.broadcast %17 : vector<1x512xf32> to vector<2x512xf32>
    %19 = arith.addf %16, %18 : vector<2x512xf32>
    %cst_16 = arith.constant 0.000000e+00 : f32
    %20 = vector.broadcast %cst_16 : f32 to vector<2x512xf32>
    %21 = arith.maximumf %19, %20 : vector<2x512xf32>
    %22 = arith.truncf %21 : vector<2x512xf32> to vector<2x512xbf16>
    %c0_17 = arith.constant 0 : index
    %c0_18 = arith.constant 0 : index
    %23 = vector.load %arg8[%c0_17, %c0_18] : memref<512x128xbf16, #tpu.memory_space<vmem>>, vector<512x128xbf16>
    %cst_19 = arith.constant dense<0.000000e+00> : vector<2x128xf32>
    %24 = tpu.matmul %22, %23, %cst_19 {dimension_numbers = #tpu.dot_dimension_numbers<[1], [0], [0], [1], [0, 0, 1, 1], [], []>} : vector<2x512xbf16>, vector<512x128xbf16>, vector<2x128xf32> -> vector<2x128xf32>
    %c0_20 = arith.constant 0 : index
    %c0_21 = arith.constant 0 : index
    %25 = vector.load %arg9[%c0_20, %c0_21] : memref<1x128xf32, #tpu.memory_space<vmem>>, vector<1x128xf32>
    %26 = vector.broadcast %25 : vector<1x128xf32> to vector<2x128xf32>
    %27 = arith.addf %24, %26 : vector<2x128xf32>
    %28 = arith.truncf %27 : vector<2x128xf32> to vector<2x128xbf16>
    %c0_22 = arith.constant 0 : index
    %c0_23 = arith.constant 0 : index
    %29 = vector.load %arg10[%c0_22, %c0_23] : memref<2x128xbf16, #tpu.memory_space<vmem>>, vector<2x128xbf16>
    tpu.vector_store %arg10[%c0_22, %c0_23], %28 {strides = array<i32>} : memref<2x128xbf16, #tpu.memory_space<vmem>>, vector<2x128xbf16>,
    return
  }
  func.func @transform_0(%arg0: i32) -> (i32, i32) {
    %c0_i32 = arith.constant 0 : i32
    %c0_i32_0 = arith.constant 0 : i32
    return %arg0, %c0_i32 : i32, i32
  }
  func.func @transform_1(%arg0: i32) -> (i32, i32) {
    %c0_i32 = arith.constant 0 : i32
    %c0_i32_0 = arith.constant 0 : i32
    return %arg0, %c0_i32 : i32, i32
  }
  func.func @transform_2(%arg0: i32) -> (i32, i32) {
    %c0_i32 = arith.constant 0 : i32
    %c0_i32_0 = arith.constant 0 : i32
    %c0_i32_1 = arith.constant 0 : i32
    return %c0_i32, %c0_i32_0 : i32, i32
  }
  func.func @transform_3(%arg0: i32) -> (i32, i32) {
    %c0_i32 = arith.constant 0 : i32
    %c0_i32_0 = arith.constant 0 : i32
    %c0_i32_1 = arith.constant 0 : i32
    return %c0_i32, %c0_i32_0 : i32, i32
  }
  func.func @transform_4(%arg0: i32) -> (i32, i32) {
    %c0_i32 = arith.constant 0 : i32
    %c0_i32_0 = arith.constant 0 : i32
    %c0_i32_1 = arith.constant 0 : i32
    return %c0_i32, %c0_i32_0 : i32, i32
  }
  func.func @transform_5(%arg0: i32) -> (i32, i32) {
    %c0_i32 = arith.constant 0 : i32
    %c0_i32_0 = arith.constant 0 : i32
    %c0_i32_1 = arith.constant 0 : i32
    return %c0_i32, %c0_i32_0 : i32, i32
  }
  func.func @transform_6(%arg0: i32) -> (i32, i32) {
    %c0_i32 = arith.constant 0 : i32
    %c0_i32_0 = arith.constant 0 : i32
    %c0_i32_1 = arith.constant 0 : i32
    return %c0_i32, %c0_i32_0 : i32, i32
  }
  func.func @transform_7(%arg0: i32) -> (i32, i32) {
    %c0_i32 = arith.constant 0 : i32
    %c0_i32_0 = arith.constant 0 : i32
    %c0_i32_1 = arith.constant 0 : i32
    return %c0_i32, %c0_i32_0 : i32, i32
  }
  func.func @transform_8(%arg0: i32) -> (i32, i32) {
    %c0_i32 = arith.constant 0 : i32
    %c0_i32_0 = arith.constant 0 : i32
    %c0_i32_1 = arith.constant 0 : i32
    return %c0_i32, %c0_i32_0 : i32, i32
  }
  func.func @transform_9(%arg0: i32) -> (i32, i32) {
    %c0_i32 = arith.constant 0 : i32
    %c0_i32_0 = arith.constant 0 : i32
    return %arg0, %c0_i32 : i32, i32
  }
}

</mosaic_0001>

<llo_original>
// kernel: policy_forward.1
$region0: #{policy_forward.1}
  #allocation0 [shape = 'u32[]', space=smem, size = 0x4, offset = 0x4, fixed_abs, tag = 'smem constant byte address 0x4 - core index']
  #allocation1 [shape = 'u32[144,128]{1,0:T(1,128)}', space=vmem, size = 0x12000, scoped, tag = 'internal scratch']
  %s0 = inlined_call_operand.hbm [shape: f32[2,16], index: 0, kind: input, shape index: {}]
  %s1 = inlined_call_operand.vmem [shape: f32[2,16], index: 1, kind: input, shape index: {}]
  %s2 = inlined_call_operand.hbm [shape: bf16[16,512], index: 2, kind: input, shape index: {}]
  %s3 = inlined_call_operand.hbm [shape: bf16[16,512], index: 3, kind: input, shape index: {}]
  %s4 = inlined_call_operand.vmem [shape: f32[1,512], index: 4, kind: input, shape index: {}]
  %s5 = inlined_call_operand.hbm [shape: bf16[512,512], index: 5, kind: input, shape index: {}]
  %s6 = inlined_call_operand.vmem [shape: f32[1,512], index: 6, kind: input, shape index: {}]
  %s7 = inlined_call_operand.hbm [shape: bf16[512,128], index: 7, kind: input, shape index: {}]
  %s8 = inlined_call_operand.vmem [shape: f32[1,128], index: 8, kind: input, shape index: {}]
  %s9 = inlined_call_operand.vmem [shape: bf16[2,128], index: 9, kind: output, shape index: {}]
  %s10 = sld [smem:[#allocation0]]
  $region66: #{policy_forward.1} parent=0
    _
  %s12 = ssub.s32 1, %s10
  %s13 = scalar_select 0, %s12, %s10
  $region1: #{policy_forward.1} parent=0
    #allocation2 [shape = 'u8[1024]{0}', space=vmem, size = 0x400, scoped, tag = 'input window, operand 0, single buffered']
    #allocation3 [shape = 's32[1]{0}', space=sflag, size = 0x4, scoped, tag = 'scoped memory for policy_forward.1']
    #allocation4 [shape = 'u8[16384]{0}', space=vmem, size = 0x4000, scoped, tag = 'input window, operand 2, single buffered']
    #allocation5 [shape = 's32[1]{0}', space=sflag, size = 0x4, scoped, tag = 'scoped memory for policy_forward.1']
    #allocation6 [shape = 'u8[16384]{0}', space=vmem, size = 0x4000, scoped, tag = 'input window, operand 3, single buffered']
    #allocation7 [shape = 'u8[524288]{0}', space=vmem, size = 0x80000, scoped, tag = 'input window, operand 5, single buffered']
    #allocation8 [shape = 's32[1]{0}', space=sflag, size = 0x4, scoped, tag = 'scoped memory for policy_forward.1']
    #allocation9 [shape = 'u8[131072]{0}', space=vmem, size = 0x20000, scoped, tag = 'input window, operand 7, single buffered']
    %14 = vsyncpa [#allocation3], 0
    %15 = vsyncpa [#allocation5], 0
    %16 = vsyncpa [#allocation8], 0
    // Predicated region
    $region2: #{policy_forward.1} parent=1 // pred_check
      _
    $region3: #{policy_forward.1} parent=1 // pred_check_branch
      %18 = sbr.rel (0) target = $region5
    $region4: #{policy_forward.1} parent=1 // pred_region
      %s20 = ssub.s32 32, 32
      %21 = vsyncadd [#allocation3], %s20
      %s23 = sshll.u32 [#allocation2], 4
      %s24 = int_to_ptr.vmem [resolvable:$true] %s23
      %26 = dma.hbm_to_vmem [thread:$0]  %s0, 32, %s24, [#allocation3]
    $region5: #{policy_forward.1} parent=1 // pred_fallthru
      _
    // Predicated region
    $region6: #{policy_forward.1} parent=1 // pred_check
      _
    $region7: #{policy_forward.1} parent=1 // pred_check_branch
      %28 = sbr.rel (0) target = $region9
    $region8: #{policy_forward.1} parent=1 // pred_region
      _
    $region9: #{policy_forward.1} parent=1 // pred_fallthru
      _
    // Predicated region
    $region10: #{policy_forward.1} parent=1 // pred_check
      _
    $region11: #{policy_forward.1} parent=1 // pred_check_branch
      %30 = sbr.rel (0) target = $region13
    $region12: #{policy_forward.1} parent=1 // pred_region
      %s32 = ssub.s32 512, 512
      %33 = vsyncadd [#allocation5], %s32
      %s34 = sshll.u32 [#allocation4], 4
      %s35 = int_to_ptr.vmem [resolvable:$true] %s34
      %40 = dma.hbm_to_vmem [thread:$0]  %s2, 512, %s35, [#allocation5], 256, 256, 16
    $region13: #{policy_forward.1} parent=1 // pred_fallthru
      _
    // Predicated region
    $region14: #{policy_forward.1} parent=1 // pred_check
      _
    $region15: #{policy_forward.1} parent=1 // pred_check_branch
      %42 = sbr.rel (0) target = $region17
    $region16: #{policy_forward.1} parent=1 // pred_region
      %s44 = ssub.s32 512, 512
      %45 = vsyncadd [#allocation5], %s44
      %s46 = sshll.u32 [#allocation6], 4
      %s47 = int_to_ptr.vmem [resolvable:$true] %s46
      %52 = dma.hbm_to_vmem [thread:$0]  %s3, 512, %s47, [#allocation5], 256, 256, 16
    $region17: #{policy_forward.1} parent=1 // pred_fallthru
      _
    // Predicated region
    $region18: #{policy_forward.1} parent=1 // pred_check
      _
    $region19: #{policy_forward.1} parent=1 // pred_check_branch
      %54 = sbr.rel (0) target = $region21
    $region20: #{policy_forward.1} parent=1 // pred_region
      _
    $region21: #{policy_forward.1} parent=1 // pred_fallthru
      _
    // Predicated region
    $region22: #{policy_forward.1} parent=1 // pred_check
      _
    $region23: #{policy_forward.1} parent=1 // pred_check_branch
      %56 = sbr.rel (0) target = $region25
    $region24: #{policy_forward.1} parent=1 // pred_region
      %s58 = ssub.s32 16384, 16384
      %59 = vsyncadd [#allocation8], %s58
      %s60 = sshll.u32 [#allocation7], 4
      %s61 = int_to_ptr.vmem [resolvable:$true] %s60
      %66 = dma.hbm_to_vmem [thread:$0]  %s5, 16384, %s61, [#allocation8], 256, 256, 16
    $region25: #{policy_forward.1} parent=1 // pred_fallthru
      _
    // Predicated region
    $region26: #{policy_forward.1} parent=1 // pred_check
      _
    $region27: #{policy_forward.1} parent=1 // pred_check_branch
      %68 = sbr.rel (0) target = $region29
    $region28: #{policy_forward.1} parent=1 // pred_region
      _
    $region29: #{policy_forward.1} parent=1 // pred_fallthru
      _
    // Predicated region
    $region30: #{policy_forward.1} parent=1 // pred_check
      _
    $region31: #{policy_forward.1} parent=1 // pred_check_branch
      %70 = sbr.rel (0) target = $region33
    $region32: #{policy_forward.1} parent=1 // pred_region
      %s72 = ssub.s32 4096, 4096
      %73 = vsyncadd [#allocation8], %s72
      %s74 = sshll.u32 [#allocation9], 4
      %s75 = int_to_ptr.vmem [resolvable:$true] %s74
      %80 = dma.hbm_to_vmem [thread:$0]  %s7, 4096, %s75, [#allocation8], 64, 64, 4
    $region33: #{policy_forward.1} parent=1 // pred_fallthru
      _
    // Predicated region
    $region34: #{policy_forward.1} parent=1 // pred_check
      _
    $region35: #{policy_forward.1} parent=1 // pred_check_branch
      %82 = sbr.rel (0) target = $region37
    $region36: #{policy_forward.1} parent=1 // pred_region
      _
    $region37: #{policy_forward.1} parent=1 // pred_fallthru
      _
    // Predicated region
    $region38: #{policy_forward.1} parent=1 // pred_check
      _
    $region39: #{policy_forward.1} parent=1 // pred_check_branch
      %84 = sbr.rel (0) target = $region41
    $region40: #{policy_forward.1} parent=1 // pred_region
      %85 = dma.done [#allocation3], 32
    $region41: #{policy_forward.1} parent=1 // pred_fallthru
      _
    // Predicated region
    $region42: #{policy_forward.1} parent=1 // pred_check
      _
    $region43: #{policy_forward.1} parent=1 // pred_check_branch
      %87 = sbr.rel (0) target = $region45
    $region44: #{policy_forward.1} parent=1 // pred_region
      %88 = dma.done [#allocation5], 512
    $region45: #{policy_forward.1} parent=1 // pred_fallthru
      _
    // Predicated region
    $region46: #{policy_forward.1} parent=1 // pred_check
      _
    $region47: #{policy_forward.1} parent=1 // pred_check_branch
      %90 = sbr.rel (0) target = $region49
    $region48: #{policy_forward.1} parent=1 // pred_region
      %91 = dma.done [#allocation5], 512
    $region49: #{policy_forward.1} parent=1 // pred_fallthru
      _
    // Predicated region
    $region50: #{policy_forward.1} parent=1 // pred_check
      _
    $region51: #{policy_forward.1} parent=1 // pred_check_branch
      %93 = sbr.rel (0) target = $region53
    $region52: #{policy_forward.1} parent=1 // pred_region
      %94 = dma.done [#allocation8], 16384
    $region53: #{policy_forward.1} parent=1 // pred_fallthru
      _
    // Predicated region
    $region54: #{policy_forward.1} parent=1 // pred_check
      _
    $region55: #{policy_forward.1} parent=1 // pred_check_branch
      %96 = sbr.rel (0) target = $region57
    $region56: #{policy_forward.1} parent=1 // pred_region
      %97 = dma.done [#allocation8], 4096
    $region57: #{policy_forward.1} parent=1 // pred_fallthru
      _
    %v99 = vld [vmem:[#allocation2] sm:$0x3]
    %v100 = vpack.c.bf16 %v99, %v99
    %v101 = vld [vmem:[%s1] sm:$0x3]
    %v102 = vpack.c.bf16 %v101, %v101
    %v103 = vld [vmem:[#allocation4] sm:$0xff]
    %v104 = vld [vmem:[#allocation4 + $0x8] sm:$0xff]
    %v105 = vld [vmem:[#allocation4 + $0x10] sm:$0xff]
    %v106 = vld [vmem:[#allocation4 + $0x18] sm:$0xff]
    %v107 = vld [vmem:[#allocation6] sm:$0xff]
    %v108 = vld [vmem:[#allocation6 + $0x8] sm:$0xff]
    %v109 = vld [vmem:[#allocation6 + $0x10] sm:$0xff]
    %v110 = vld [vmem:[#allocation6 + $0x18] sm:$0xff]
    %v115 = vunpack.c.l.b16 %v107
    %v116 = vunpack.c.h.b16 %v107
    %v117 = vunpack.c.l.b16 %v108
    %v118 = vunpack.c.h.b16 %v108
    %v119 = vunpack.c.l.b16 %v109
    %v120 = vunpack.c.h.b16 %v109
    %v121 = vunpack.c.l.b16 %v110
    %v122 = vunpack.c.h.b16 %v110
    %v123 = vpack.c.b16 %v119, %v115
    %v124 = vpack.c.b16 %v120, %v116
    %v125 = vpack.c.b16 %v121, %v117
    %v126 = vpack.c.b16 %v122, %v118
    %vm131 = vcmask 130048
    %v133 = vsel %vm131, %v102, 0
    %135 = vmatprep.subr.bf16.mxu0 %v124
    %136 = vmatpush1.bf16.msra.mxu0 %v123
    %137 = vmatprep.subr.bf16.mxu0 0
    %138 = vmatpush1.bf16.msra.mxu0 0
    %139 = vmatprep.subr.bf16.mxu0 0
    %140 = vmatpush1.bf16.msra.mxu0 0
    %141 = vmatprep.subr.bf16.mxu0 0
    %142 = vmatpush1.bf16.msra.mxu0 0
    %143 = vmatprep.subr.bf16.mxu0 0
    %144 = vmatpush1.bf16.msra.mxu0 0
    %145 = vmatprep.subr.bf16.mxu0 0
    %146 = vmatpush1.bf16.msra.mxu0 0
    %147 = vmatprep.subr.bf16.mxu0 0
    %148 = vmatpush1.bf16.msra.mxu0 0
    %149 = vmatprep.subr.bf16.mxu0 0
    %150 = vmatpush1.bf16.msra.mxu0 0
    %151 = vmatprep.subr.bf16.mxu0 0
    %152 = vmatpush1.bf16.msra.mxu0 0
    %153 = vmatprep.subr.bf16.mxu0 0
    %154 = vmatpush1.bf16.msra.mxu0 0
    %155 = vmatprep.subr.bf16.mxu0 0
    %156 = vmatpush1.bf16.msra.mxu0 0
    %157 = vmatprep.subr.bf16.mxu0 0
    %158 = vmatpush1.bf16.msra.mxu0 0
    %159 = vmatprep.subr.bf16.mxu0 0
    %160 = vmatpush1.bf16.msra.mxu0 0
    %161 = vmatprep.subr.bf16.mxu0 0
    %162 = vmatpush1.bf16.msra.mxu0 0
    %163 = vmatprep.subr.bf16.mxu0 0
    %164 = vmatpush1.bf16.msra.mxu0 0
    %165 = vmatprep.subr.bf16.mxu0 0
    %166 = vmatpush1.bf16.msra.mxu0 0
    %167 = vmatprep.mubr.bf16.mxu0 0
    %168 = vmatmul.mubr.bf16.gmra.mrb[0].mxu0 %v133
    %v169 = vpop.f32.mrb[0].mxu0
    %v170 = vadd.f32 0.0, %v169
    %v171 = vpop.f32.mrb[0].mxu0
    %v172 = vadd.f32 0.0, %v171
    %v173 = vpop.f32.mrb[0].mxu0
    %v174 = vpop.f32.mrb[0].mxu0
    %175 = vdwg.mxu0
    %176 = vmatprep.subr.bf16.mxu0 %v126
    %177 = vmatpush1.bf16.msra.mxu0 %v125
    %178 = vmatprep.subr.bf16.mxu0 0
    %179 = vmatpush1.bf16.msra.mxu0 0
    %180 = vmatprep.subr.bf16.mxu0 0
    %181 = vmatpush1.bf16.msra.mxu0 0
    %182 = vmatprep.subr.bf16.mxu0 0
    %183 = vmatpush1.bf16.msra.mxu0 0
    %184 = vmatprep.subr.bf16.mxu0 0
    %185 = vmatpush1.bf16.msra.mxu0 0
    %186 = vmatprep.subr.bf16.mxu0 0
    %187 = vmatpush1.bf16.msra.mxu0 0
    %188 = vmatprep.subr.bf16.mxu0 0
    %189 = vmatpush1.bf16.msra.mxu0 0
    %190 = vmatprep.subr.bf16.mxu0 0
    %191 = vmatpush1.bf16.msra.mxu0 0
    %192 = vmatprep.subr.bf16.mxu0 0
    %193 = vmatpush1.bf16.msra.mxu0 0
    %194 = vmatprep.subr.bf16.mxu0 0
    %195 = vmatpush1.bf16.msra.mxu0 0
    %196 = vmatprep.subr.bf16.mxu0 0
    %197 = vmatpush1.bf16.msra.mxu0 0
    %198 = vmatprep.subr.bf16.mxu0 0
    %199 = vmatpush1.bf16.msra.mxu0 0
    %200 = vmatprep.subr.bf16.mxu0 0
    %201 = vmatpush1.bf16.msra.mxu0 0
    %202 = vmatprep.subr.bf16.mxu0 0
    %203 = vmatpush1.bf16.msra.mxu0 0
    %204 = vmatprep.subr.bf16.mxu0 0
    %205 = vmatpush1.bf16.msra.mxu0 0
    %206 = vmatprep.subr.bf16.mxu0 0
    %207 = vmatpush1.bf16.msra.mxu0 0
    %208 = vmatprep.mubr.bf16.mxu0 0
    %209 = vmatmul.mubr.bf16.gmra.mrb[0].mxu0 %v133
    %v210 = vpop.f32.mrb[0].mxu0
    %v211 = vadd.f32 0.0, %v210
    %v212 = vpop.f32.mrb[0].mxu0
    %v213 = vadd.f32 0.0, %v212
    %v214 = vpop.f32.mrb[0].mxu0
    %v215 = vpop.f32.mrb[0].mxu0
    %216 = vdwg.mxu0
    %v221 = vunpack.c.l.b16 %v103
    %v222 = vunpack.c.h.b16 %v103
    %v223 = vunpack.c.l.b16 %v104
    %v224 = vunpack.c.h.b16 %v104
    %v225 = vunpack.c.l.b16 %v105
    %v226 = vunpack.c.h.b16 %v105
    %v227 = vunpack.c.l.b16 %v106
    %v228 = vunpack.c.h.b16 %v106
    %v229 = vpack.c.b16 %v225, %v221
    %v230 = vpack.c.b16 %v226, %v222
    %v231 = vpack.c.b16 %v227, %v223
    %v232 = vpack.c.b16 %v228, %v224
    %v238 = vsel %vm131, %v100, 0
    %240 = vmatprep.subr.bf16.mxu0 %v230
    %241 = vmatpush1.bf16.msra.mxu0 %v229
    %242 = vmatprep.subr.bf16.mxu0 0
    %243 = vmatpush1.bf16.msra.mxu0 0
    %244 = vmatprep.subr.bf16.mxu0 0
    %245 = vmatpush1.bf16.msra.mxu0 0
    %246 = vmatprep.subr.bf16.mxu0 0
    %247 = vmatpush1.bf16.msra.mxu0 0
    %248 = vmatprep.subr.bf16.mxu0 0
    %249 = vmatpush1.bf16.msra.mxu0 0
    %250 = vmatprep.subr.bf16.mxu0 0
    %251 = vmatpush1.bf16.msra.mxu0 0
    %252 = vmatprep.subr.bf16.mxu0 0
    %253 = vmatpush1.bf16.msra.mxu0 0
    %254 = vmatprep.subr.bf16.mxu0 0
    %255 = vmatpush1.bf16.msra.mxu0 0
    %256 = vmatprep.subr.bf16.mxu0 0
    %257 = vmatpush1.bf16.msra.mxu0 0
    %258 = vmatprep.subr.bf16.mxu0 0
    %259 = vmatpush1.bf16.msra.mxu0 0
    %260 = vmatprep.subr.bf16.mxu0 0
    %261 = vmatpush1.bf16.msra.mxu0 0
    %262 = vmatprep.subr.bf16.mxu0 0
    %263 = vmatpush1.bf16.msra.mxu0 0
    %264 = vmatprep.subr.bf16.mxu0 0
    %265 = vmatpush1.bf16.msra.mxu0 0
    %266 = vmatprep.subr.bf16.mxu0 0
    %267 = vmatpush1.bf16.msra.mxu0 0
    %268 = vmatprep.subr.bf16.mxu0 0
    %269 = vmatpush1.bf16.msra.mxu0 0
    %270 = vmatprep.subr.bf16.mxu0 0
    %271 = vmatpush1.bf16.msra.mxu0 0
    %272 = vmatprep.mubr.bf16.mxu0 0
    %273 = vmatmul.mubr.bf16.gmra.mrb[0].mxu0 %v238
    %v274 = vpop.f32.mrb[0].mxu0
    %v275 = vadd.f32 %v170, %v274
    %v276 = vpop.f32.mrb[0].mxu0
    %v277 = vadd.f32 %v172, %v276
    %v278 = vpop.f32.mrb[0].mxu0
    %v279 = vpop.f32.mrb[0].mxu0
    %280 = vdwg.mxu0
    %281 = vmatprep.subr.bf16.mxu0 %v232
    %282 = vmatpush1.bf16.msra.mxu0 %v231
    %283 = vmatprep.subr.bf16.mxu0 0
    %284 = vmatpush1.bf16.msra.mxu0 0
    %285 = vmatprep.subr.bf16.mxu0 0
    %286 = vmatpush1.bf16.msra.mxu0 0
    %287 = vmatprep.subr.bf16.mxu0 0
    %288 = vmatpush1.bf16.msra.mxu0 0
    %289 = vmatprep.subr.bf16.mxu0 0
    %290 = vmatpush1.bf16.msra.mxu0 0
    %291 = vmatprep.subr.bf16.mxu0 0
    %292 = vmatpush1.bf16.msra.mxu0 0
    %293 = vmatprep.subr.bf16.mxu0 0
    %294 = vmatpush1.bf16.msra.mxu0 0
    %295 = vmatprep.subr.bf16.mxu0 0
    %296 = vmatpush1.bf16.msra.mxu0 0
    %297 = vmatprep.subr.bf16.mxu0 0
    %298 = vmatpush1.bf16.msra.mxu0 0
    %299 = vmatprep.subr.bf16.mxu0 0
    %300 = vmatpush1.bf16.msra.mxu0 0
    %301 = vmatprep.subr.bf16.mxu0 0
    %302 = vmatpush1.bf16.msra.mxu0 0
    %303 = vmatprep.subr.bf16.mxu0 0
    %304 = vmatpush1.bf16.msra.mxu0 0
    %305 = vmatprep.subr.bf16.mxu0 0
    %306 = vmatpush1.bf16.msra.mxu0 0
    %307 = vmatprep.subr.bf16.mxu0 0
    %308 = vmatpush1.bf16.msra.mxu0 0
    %309 = vmatprep.subr.bf16.mxu0 0
    %310 = vmatpush1.bf16.msra.mxu0 0
    %311 = vmatprep.subr.bf16.mxu0 0
    %312 = vmatpush1.bf16.msra.mxu0 0
    %313 = vmatprep.mubr.bf16.mxu0 0
    %314 = vmatmul.mubr.bf16.gmra.mrb[0].mxu0 %v238
    %v315 = vpop.f32.mrb[0].mxu0
    %v316 = vadd.f32 %v211, %v315
    %v317 = vpop.f32.mrb[0].mxu0
    %v318 = vadd.f32 %v213, %v317
    %v319 = vpop.f32.mrb[0].mxu0
    %v320 = vpop.f32.mrb[0].mxu0
    %321 = vdwg.mxu0
    %v322 = vld [vmem:[%s4] sm:$0xf]
    %v324 = vlaneseq
    %v325 = vshrl.u32 %v324, 7
    %v326 = vsub.s32 0, %v325
    %v327 = vrot.slane %v322, %v326
    %v328 = vlaneseq
    %v329 = vshrl.u32 %v328, 7
    %v330 = vsub.s32 1, %v329
    %v331 = vrot.slane %v322, %v330
    %v332 = vlaneseq
    %v333 = vshrl.u32 %v332, 7
    %v334 = vsub.s32 2, %v333
    %v335 = vrot.slane %v322, %v334
    %v336 = vlaneseq
    %v337 = vshrl.u32 %v336, 7
    %v338 = vsub.s32 3, %v337
    %v339 = vrot.slane %v322, %v338
    %v344 = vadd.f32 %v275, %v327
    %v345 = vadd.f32 %v277, %v331
    %v346 = vadd.f32 %v316, %v335
    %v347 = vadd.f32 %v318, %v339
    %v348 = vmax.f32 %v344, 0.0
    %v349 = vmax.f32 %v345, 0.0
    %v350 = vmax.f32 %v346, 0.0
    %v351 = vmax.f32 %v347, 0.0
    %v352 = vpack.c.bf16 %v348, %v348
    %v353 = vpack.c.bf16 %v349, %v349
    %v354 = vpack.c.bf16 %v350, %v350
    %v355 = vpack.c.bf16 %v351, %v351
    %v356 = vld [vmem:[#allocation7] sm:$0xff]
    %v357 = vld [vmem:[#allocation7 + $0x8] sm:$0xff]
    %v358 = vld [vmem:[#allocation7 + $0x10] sm:$0xff]
    %v359 = vld [vmem:[#allocation7 + $0x18] sm:$0xff]
    %v360 = vld [vmem:[#allocation7 + $0x20] sm:$0xff]
    %v361 = vld [vmem:[#allocation7 + $0x28] sm:$0xff]
    %v362 = vld [vmem:[#allocation7 + $0x30] sm:$0xff]
    %v363 = vld [vmem:[#allocation7 + $0x38] sm:$0xff]
    %v364 = vld [vmem:[#allocation7 + $0x40] sm:$0xff]
    %v365 = vld [vmem:[#allocation7 + $0x48] sm:$0xff]
    %v366 = vld [vmem:[#allocation7 + $0x50] sm:$0xff]
    %v367 = vld [vmem:[#allocation7 + $0x58] sm:$0xff]
    %v368 = vld [vmem:[#allocation7 + $0x60] sm:$0xff]
    %v369 = vld [vmem:[#allocation7 + $0x68] sm:$0xff]
    %v370 = vld [vmem:[#allocation7 + $0x70] sm:$0xff]
    %v371 = vld [vmem:[#allocation7 + $0x78] sm:$0xff]
    %v372 = vld [vmem:[#allocation7 + $0x80] sm:$0xff]
    %v373 = vld [vmem:[#allocation7 + $0x88] sm:$0xff]
    %v374 = vld [vmem:[#allocation7 + $0x90] sm:$0xff]
    %v375 = vld [vmem:[#allocation7 + $0x98] sm:$0xff]
    %v376 = vld [vmem:[#allocation7 + $0xa0] sm:$0xff]
    %v377 = vld [vmem:[#allocation7 + $0xa8] sm:$0xff]
    %v378 = vld [vmem:[#allocation7 + $0xb0] sm:$0xff]
    %v379 = vld [vmem:[#allocation7 + $0xb8] sm:$0xff]
    %v380 = vld [vmem:[#allocation7 + $0xc0] sm:$0xff]
    %v381 = vld [vmem:[#allocation7 + $0xc8] sm:$0xff]
    %v382 = vld [vmem:[#allocation7 + $0xd0] sm:$0xff]
    %v383 = vld [vmem:[#allocation7 + $0xd8] sm:$0xff]
    %v384 = vld [vmem:[#allocation7 + $0xe0] sm:$0xff]
    %v385 = vld [vmem:[#allocation7 + $0xe8] sm:$0xff]
    %v386 = vld [vmem:[#allocation7 + $0xf0] sm:$0xff]
    %v387 = vld [vmem:[#allocation7 + $0xf8] sm:$0xff]
    %v388 = vld [vmem:[#allocation7 + $0x100] sm:$0xff]
    %v389 = vld [vmem:[#allocation7 + $0x108] sm:$0xff]
    %v390 = vld [vmem:[#allocation7 + $0x110] sm:$0xff]
    %v391 = vld [vmem:[#allocation7 + $0x118] sm:$0xff]
    %v392 = vld [vmem:[#allocation7 + $0x120] sm:$0xff]
    %v393 = vld [vmem:[#allocation7 + $0x128] sm:$0xff]
    %v394 = vld [vmem:[#allocation7 + $0x130] sm:$0xff]
    %v395 = vld [vmem:[#allocation7 + $0x138] sm:$0xff]
    %v396 = vld [vmem:[#allocation7 + $0x140] sm:$0xff]
    %v397 = vld [vmem:[#allocation7 + $0x148] sm:$0xff]
    %v398 = vld [vmem:[#allocation7 + $0x150] sm:$0xff]
    %v399 = vld [vmem:[#allocation7 + $0x158] sm:$0xff]
    %v400 = vld [vmem:[#allocation7 + $0x160] sm:$0xff]
    %v401 = vld [vmem:[#allocation7 + $0x168] sm:$0xff]
    %v402 = vld [vmem:[#allocation7 + $0x170] sm:$0xff]
    %v403 = vld [vmem:[#allocation7 + $0x178] sm:$0xff]
    %v404 = vld [vmem:[#allocation7 + $0x180] sm:$0xff]
    %v405 = vld [vmem:[#allocation7 + $0x188] sm:$0xff]
    %v406 = vld [vmem:[#allocation7 + $0x190] sm:$0xff]
    %v407 = vld [vmem:[#allocation7 + $0x198] sm:$0xff]
    %v408 = vld [vmem:[#allocation7 + $0x1a0] sm:$0xff]
    %v409 = vld [vmem:[#allocation7 + $0x1a8] sm:$0xff]
    %v410 = vld [vmem:[#allocation7 + $0x1b0] sm:$0xff]
    %v411 = vld [vmem:[#allocation7 + $0x1b8] sm:$0xff]
    %v412 = vld [vmem:[#allocation7 + $0x1c0] sm:$0xff]
    %v413 = vld [vmem:[#allocation7 + $0x1c8] sm:$0xff]
    %v414 = vld [vmem:[#allocation7 + $0x1d0] sm:$0xff]
    %v415 = vld [vmem:[#allocation7 + $0x1d8] sm:$0xff]
    %v416 = vld [vmem:[#allocation7 + $0x1e0] sm:$0xff]
    %v417 = vld [vmem:[#allocation7 + $0x1e8] sm:$0xff]
    %v418 = vld [vmem:[#allocation7 + $0x1f0] sm:$0xff]
    %v419 = vld [vmem:[#allocation7 + $0x1f8] sm:$0xff]
    %v420 = vld [vmem:[#allocation7 + $0x200] sm:$0xff]
    %v421 = vld [vmem:[#allocation7 + $0x208] sm:$0xff]
    %v422 = vld [vmem:[#allocation7 + $0x210] sm:$0xff]
    %v423 = vld [vmem:[#allocation7 + $0x218] sm:$0xff]
    %v424 = vld [vmem:[#allocation7 + $0x220] sm:$0xff]
    %v425 = vld [vmem:[#allocation7 + $0x228] sm:$0xff]
    %v426 = vld [vmem:[#allocation7 + $0x230] sm:$0xff]
    %v427 = vld [vmem:[#allocation7 + $0x238] sm:$0xff]
    %v428 = vld [vmem:[#allocation7 + $0x240] sm:$0xff]
    %v429 = vld [vmem:[#allocation7 + $0x248] sm:$0xff]
    %v430 = vld [vmem:[#allocation7 + $0x250] sm:$0xff]
    %v431 = vld [vmem:[#allocation7 + $0x258] sm:$0xff]
    %v432 = vld [vmem:[#allocation7 + $0x260] sm:$0xff]
    %v433 = vld [vmem:[#allocation7 + $0x268] sm:$0xff]
    %v434 = vld [vmem:[#allocation7 + $0x270] sm:$0xff]
    %v435 = vld [vmem:[#allocation7 + $0x278] sm:$0xff]
    %v436 = vld [vmem:[#allocation7 + $0x280] sm:$0xff]
    %v437 = vld [vmem:[#allocation7 + $0x288] sm:$0xff]
    %v438 = vld [vmem:[#allocation7 + $0x290] sm:$0xff]
    %v439 = vld [vmem:[#allocation7 + $0x298] sm:$0xff]
    %v440 = vld [vmem:[#allocation7 + $0x2a0] sm:$0xff]
    %v441 = vld [vmem:[#allocation7 + $0x2a8] sm:$0xff]
    %v442 = vld [vmem:[#allocation7 + $0x2b0] sm:$0xff]
    %v443 = vld [vmem:[#allocation7 + $0x2b8] sm:$0xff]
    %v444 = vld [vmem:[#allocation7 + $0x2c0] sm:$0xff]
    %v445 = vld [vmem:[#allocation7 + $0x2c8] sm:$0xff]
    %v446 = vld [vmem:[#allocation7 + $0x2d0] sm:$0xff]
    %v447 = vld [vmem:[#allocation7 + $0x2d8] sm:$0xff]
    %v448 = vld [vmem:[#allocation7 + $0x2e0] sm:$0xff]
    %v449 = vld [vmem:[#allocation7 + $0x2e8] sm:$0xff]
    %v450 = vld [vmem:[#allocation7 + $0x2f0] sm:$0xff]
    %v451 = vld [vmem:[#allocation7 + $0x2f8] sm:$0xff]
    %v452 = vld [vmem:[#allocation7 + $0x300] sm:$0xff]
    %v453 = vld [vmem:[#allocation7 + $0x308] sm:$0xff]
    %v454 = vld [vmem:[#allocation7 + $0x310] sm:$0xff]
    %v455 = vld [vmem:[#allocation7 + $0x318] sm:$0xff]
    %v456 = vld [vmem:[#allocation7 + $0x320] sm:$0xff]
    %v457 = vld [vmem:[#allocation7 + $0x328] sm:$0xff]
    %v458 = vld [vmem:[#allocation7 + $0x330] sm:$0xff]
    %v459 = vld [vmem:[#allocation7 + $0x338] sm:$0xff]
    %v460 = vld [vmem:[#allocation7 + $0x340] sm:$0xff]
    %v461 = vld [vmem:[#allocation7 + $0x348] sm:$0xff]
    %v462 = vld [vmem:[#allocation7 + $0x350] sm:$0xff]
    %v463 = vld [vmem:[#allocation7 + $0x358] sm:$0xff]
    %v464 = vld [vmem:[#allocation7 + $0x360] sm:$0xff]
    %v465 = vld [vmem:[#allocation7 + $0x368] sm:$0xff]
    %v466 = vld [vmem:[#allocation7 + $0x370] sm:$0xff]
    %v467 = vld [vmem:[#allocation7 + $0x378] sm:$0xff]
    %v468 = vld [vmem:[#allocation7 + $0x380] sm:$0xff]
    %v469 = vld [vmem:[#allocation7 + $0x388] sm:$0xff]
    %v470 = vld [vmem:[#allocation7 + $0x390] sm:$0xff]
    %v471 = vld [vmem:[#allocation7 + $0x398] sm:$0xff]
    %v472 = vld [vmem:[#allocation7 + $0x3a0] sm:$0xff]
    %v473 = vld [vmem:[#allocation7 + $0x3a8] sm:$0xff]
    %v474 = vld [vmem:[#allocation7 + $0x3b0] sm:$0xff]
    %v475 = vld [vmem:[#allocation7 + $0x3b8] sm:$0xff]
    %v476 = vld [vmem:[#allocation7 + $0x3c0] sm:$0xff]
    %v477 = vld [vmem:[#allocation7 + $0x3c8] sm:$0xff]
    %v478 = vld [vmem:[#allocation7 + $0x3d0] sm:$0xff]
    %v479 = vld [vmem:[#allocation7 + $0x3d8] sm:$0xff]
    %v480 = vld [vmem:[#allocation7 + $0x3e0] sm:$0xff]
    %v481 = vld [vmem:[#allocation7 + $0x3e8] sm:$0xff]
    %v482 = vld [vmem:[#allocation7 + $0x3f0] sm:$0xff]
    %v483 = vld [vmem:[#allocation7 + $0x3f8] sm:$0xff]
    %v484 = vld [vmem:[%s6] sm:$0xf]
    %v486 = vlaneseq
    %v487 = vshrl.u32 %v486, 7
    %v488 = vsub.s32 0, %v487
    %v489 = vrot.slane %v484, %v488
    %v490 = vlaneseq
    %v491 = vshrl.u32 %v490, 7
    %v492 = vsub.s32 1, %v491
    %v493 = vrot.slane %v484, %v492
    %v494 = vlaneseq
    %v495 = vshrl.u32 %v494, 7
    %v496 = vsub.s32 2, %v495
    %v497 = vrot.slane %v484, %v496
    %v498 = vlaneseq
    %v499 = vshrl.u32 %v498, 7
    %v500 = vsub.s32 3, %v499
    %v501 = vrot.slane %v484, %v500
    %v634 = vunpack.c.l.b16 %v356
    %v635 = vunpack.c.h.b16 %v356
    %v636 = vunpack.c.l.b16 %v357
    %v637 = vunpack.c.h.b16 %v357
    %v638 = vunpack.c.l.b16 %v358
    %v639 = vunpack.c.h.b16 %v358
    %v640 = vunpack.c.l.b16 %v359
    %v641 = vunpack.c.h.b16 %v359
    %v642 = vunpack.c.l.b16 %v360
    %v643 = vunpack.c.h.b16 %v360
    %v644 = vunpack.c.l.b16 %v361
    %v645 = vunpack.c.h.b16 %v361
    %v646 = vunpack.c.l.b16 %v362
    %v647 = vunpack.c.h.b16 %v362
    %v648 = vunpack.c.l.b16 %v363
    %v649 = vunpack.c.h.b16 %v363
    %v650 = vunpack.c.l.b16 %v364
    %v651 = vunpack.c.h.b16 %v364
    %v652 = vunpack.c.l.b16 %v365
    %v653 = vunpack.c.h.b16 %v365
    %v654 = vunpack.c.l.b16 %v366
    %v655 = vunpack.c.h.b16 %v366
    %v656 = vunpack.c.l.b16 %v367
    %v657 = vunpack.c.h.b16 %v367
    %v658 = vunpack.c.l.b16 %v368
    %v659 = vunpack.c.h.b16 %v368
    %v660 = vunpack.c.l.b16 %v369
    %v661 = vunpack.c.h.b16 %v369
    %v662 = vunpack.c.l.b16 %v370
    %v663 = vunpack.c.h.b16 %v370
    %v664 = vunpack.c.l.b16 %v371
    %v665 = vunpack.c.h.b16 %v371
    %v666 = vunpack.c.l.b16 %v372
    %v667 = vunpack.c.h.b16 %v372
    %v668 = vunpack.c.l.b16 %v373
    %v669 = vunpack.c.h.b16 %v373
    %v670 = vunpack.c.l.b16 %v374
    %v671 = vunpack.c.h.b16 %v374
    %v672 = vunpack.c.l.b16 %v375
    %v673 = vunpack.c.h.b16 %v375
    %v674 = vunpack.c.l.b16 %v376
    %v675 = vunpack.c.h.b16 %v376
    %v676 = vunpack.c.l.b16 %v377
    %v677 = vunpack.c.h.b16 %v377
    %v678 = vunpack.c.l.b16 %v378
    %v679 = vunpack.c.h.b16 %v378
    %v680 = vunpack.c.l.b16 %v379
    %v681 = vunpack.c.h.b16 %v379
    %v682 = vunpack.c.l.b16 %v380
    %v683 = vunpack.c.h.b16 %v380
    %v684 = vunpack.c.l.b16 %v381
    %v685 = vunpack.c.h.b16 %v381
    %v686 = vunpack.c.l.b16 %v382
    %v687 = vunpack.c.h.b16 %v382
    %v688 = vunpack.c.l.b16 %v383
    %v689 = vunpack.c.h.b16 %v383
    %v690 = vunpack.c.l.b16 %v384
    %v691 = vunpack.c.h.b16 %v384
    %v692 = vunpack.c.l.b16 %v385
    %v693 = vunpack.c.h.b16 %v385
    %v694 = vunpack.c.l.b16 %v386
    %v695 = vunpack.c.h.b16 %v386
    %v696 = vunpack.c.l.b16 %v387
    %v697 = vunpack.c.h.b16 %v387
    %v698 = vunpack.c.l.b16 %v388
    %v699 = vunpack.c.h.b16 %v388
    %v700 = vunpack.c.l.b16 %v389
    %v701 = vunpack.c.h.b16 %v389
    %v702 = vunpack.c.l.b16 %v390
    %v703 = vunpack.c.h.b16 %v390
    %v704 = vunpack.c.l.b16 %v391
    %v705 = vunpack.c.h.b16 %v391
    %v706 = vunpack.c.l.b16 %v392
    %v707 = vunpack.c.h.b16 %v392
    %v708 = vunpack.c.l.b16 %v393
    %v709 = vunpack.c.h.b16 %v393
    %v710 = vunpack.c.l.b16 %v394
    %v711 = vunpack.c.h.b16 %v394
    %v712 = vunpack.c.l.b16 %v395
    %v713 = vunpack.c.h.b16 %v395
    %v714 = vunpack.c.l.b16 %v396
    %v715 = vunpack.c.h.b16 %v396
    %v716 = vunpack.c.l.b16 %v397
    %v717 = vunpack.c.h.b16 %v397
    %v718 = vunpack.c.l.b16 %v398
    %v719 = vunpack.c.h.b16 %v398
    %v720 = vunpack.c.l.b16 %v399
    %v721 = vunpack.c.h.b16 %v399
    %v722 = vunpack.c.l.b16 %v400
    %v723 = vunpack.c.h.b16 %v400
    %v724 = vunpack.c.l.b16 %v401
    %v725 = vunpack.c.h.b16 %v401
    %v726 = vunpack.c.l.b16 %v402
    %v727 = vunpack.c.h.b16 %v402
    %v728 = vunpack.c.l.b16 %v403
    %v729 = vunpack.c.h.b16 %v403
    %v730 = vunpack.c.l.b16 %v404
    %v731 = vunpack.c.h.b16 %v404
    %v732 = vunpack.c.l.b16 %v405
    %v733 = vunpack.c.h.b16 %v405
    %v734 = vunpack.c.l.b16 %v406
    %v735 = vunpack.c.h.b16 %v406
    %v736 = vunpack.c.l.b16 %v407
    %v737 = vunpack.c.h.b16 %v407
    %v738 = vunpack.c.l.b16 %v408
    %v739 = vunpack.c.h.b16 %v408
    %v740 = vunpack.c.l.b16 %v409
    %v741 = vunpack.c.h.b16 %v409
    %v742 = vunpack.c.l.b16 %v410
    %v743 = vunpack.c.h.b16 %v410
    %v744 = vunpack.c.l.b16 %v411
    %v745 = vunpack.c.h.b16 %v411
    %v746 = vunpack.c.l.b16 %v412
    %v747 = vunpack.c.h.b16 %v412
    %v748 = vunpack.c.l.b16 %v413
    %v749 = vunpack.c.h.b16 %v413
    %v750 = vunpack.c.l.b16 %v414
    %v751 = vunpack.c.h.b16 %v414
    %v752 = vunpack.c.l.b16 %v415
    %v753 = vunpack.c.h.b16 %v415
    %v754 = vunpack.c.l.b16 %v416
    %v755 = vunpack.c.h.b16 %v416
    %v756 = vunpack.c.l.b16 %v417
    %v757 = vunpack.c.h.b16 %v417
    %v758 = vunpack.c.l.b16 %v418
    %v759 = vunpack.c.h.b16 %v418
    %v760 = vunpack.c.l.b16 %v419
    %v761 = vunpack.c.h.b16 %v419
    %v762 = vunpack.c.l.b16 %v420
    %v763 = vunpack.c.h.b16 %v420
    %v764 = vunpack.c.l.b16 %v421
    %v765 = vunpack.c.h.b16 %v421
    %v766 = vunpack.c.l.b16 %v422
    %v767 = vunpack.c.h.b16 %v422
    %v768 = vunpack.c.l.b16 %v423
    %v769 = vunpack.c.h.b16 %v423
    %v770 = vunpack.c.l.b16 %v424
    %v771 = vunpack.c.h.b16 %v424
    %v772 = vunpack.c.l.b16 %v425
    %v773 = vunpack.c.h.b16 %v425
    %v774 = vunpack.c.l.b16 %v426
    %v775 = vunpack.c.h.b16 %v426
    %v776 = vunpack.c.l.b16 %v427
    %v777 = vunpack.c.h.b16 %v427
    %v778 = vunpack.c.l.b16 %v428
    %v779 = vunpack.c.h.b16 %v428
    %v780 = vunpack.c.l.b16 %v429
    %v781 = vunpack.c.h.b16 %v429
    %v782 = vunpack.c.l.b16 %v430
    %v783 = vunpack.c.h.b16 %v430
    %v784 = vunpack.c.l.b16 %v431
    %v785 = vunpack.c.h.b16 %v431
    %v786 = vunpack.c.l.b16 %v432
    %v787 = vunpack.c.h.b16 %v432
    %v788 = vunpack.c.l.b16 %v433
    %v789 = vunpack.c.h.b16 %v433
    %v790 = vunpack.c.l.b16 %v434
    %v791 = vunpack.c.h.b16 %v434
    %v792 = vunpack.c.l.b16 %v435
    %v793 = vunpack.c.h.b16 %v435
    %v794 = vunpack.c.l.b16 %v436
    %v795 = vunpack.c.h.b16 %v436
    %v796 = vunpack.c.l.b16 %v437
    %v797 = vunpack.c.h.b16 %v437
    %v798 = vunpack.c.l.b16 %v438
    %v799 = vunpack.c.h.b16 %v438
    %v800 = vunpack.c.l.b16 %v439
    %v801 = vunpack.c.h.b16 %v439
    %v802 = vunpack.c.l.b16 %v440
    %v803 = vunpack.c.h.b16 %v440
    %v804 = vunpack.c.l.b16 %v441
    %v805 = vunpack.c.h.b16 %v441
    %v806 = vunpack.c.l.b16 %v442
    %v807 = vunpack.c.h.b16 %v442
    %v808 = vunpack.c.l.b16 %v443
    %v809 = vunpack.c.h.b16 %v443
    %v810 = vunpack.c.l.b16 %v444
    %v811 = vunpack.c.h.b16 %v444
    %v812 = vunpack.c.l.b16 %v445
    %v813 = vunpack.c.h.b16 %v445
    %v814 = vunpack.c.l.b16 %v446
    %v815 = vunpack.c.h.b16 %v446
    %v816 = vunpack.c.l.b16 %v447
    %v817 = vunpack.c.h.b16 %v447
    %v818 = vunpack.c.l.b16 %v448
    %v819 = vunpack.c.h.b16 %v448
    %v820 = vunpack.c.l.b16 %v449
    %v821 = vunpack.c.h.b16 %v449
    %v822 = vunpack.c.l.b16 %v450
    %v823 = vunpack.c.h.b16 %v450
    %v824 = vunpack.c.l.b16 %v451
    %v825 = vunpack.c.h.b16 %v451
    %v826 = vunpack.c.l.b16 %v452
    %v827 = vunpack.c.h.b16 %v452
    %v828 = vunpack.c.l.b16 %v453
    %v829 = vunpack.c.h.b16 %v453
    %v830 = vunpack.c.l.b16 %v454
    %v831 = vunpack.c.h.b16 %v454
    %v832 = vunpack.c.l.b16 %v455
    %v833 = vunpack.c.h.b16 %v455
    %v834 = vunpack.c.l.b16 %v456
    %v835 = vunpack.c.h.b16 %v456
    %v836 = vunpack.c.l.b16 %v457
    %v837 = vunpack.c.h.b16 %v457
    %v838 = vunpack.c.l.b16 %v458
    %v839 = vunpack.c.h.b16 %v458
    %v840 = vunpack.c.l.b16 %v459
    %v841 = vunpack.c.h.b16 %v459
    %v842 = vunpack.c.l.b16 %v460
    %v843 = vunpack.c.h.b16 %v460
    %v844 = vunpack.c.l.b16 %v461
    %v845 = vunpack.c.h.b16 %v461
    %v846 = vunpack.c.l.b16 %v462
    %v847 = vunpack.c.h.b16 %v462
    %v848 = vunpack.c.l.b16 %v463
    %v849 = vunpack.c.h.b16 %v463
    %v850 = vunpack.c.l.b16 %v464
    %v851 = vunpack.c.h.b16 %v464
    %v852 = vunpack.c.l.b16 %v465
    %v853 = vunpack.c.h.b16 %v465
    %v854 = vunpack.c.l.b16 %v466
    %v855 = vunpack.c.h.b16 %v466
    %v856 = vunpack.c.l.b16 %v467
    %v857 = vunpack.c.h.b16 %v467
    %v858 = vunpack.c.l.b16 %v468
    %v859 = vunpack.c.h.b16 %v468
    %v860 = vunpack.c.l.b16 %v469
    %v861 = vunpack.c.h.b16 %v469
    %v862 = vunpack.c.l.b16 %v470
    %v863 = vunpack.c.h.b16 %v470
    %v864 = vunpack.c.l.b16 %v471
    %v865 = vunpack.c.h.b16 %v471
    %v866 = vunpack.c.l.b16 %v472
    %v867 = vunpack.c.h.b16 %v472
    %v868 = vunpack.c.l.b16 %v473
    %v869 = vunpack.c.h.b16 %v473
    %v870 = vunpack.c.l.b16 %v474
    %v871 = vunpack.c.h.b16 %v474
    %v872 = vunpack.c.l.b16 %v475
    %v873 = vunpack.c.h.b16 %v475
    %v874 = vunpack.c.l.b16 %v476
    %v875 = vunpack.c.h.b16 %v476
    %v876 = vunpack.c.l.b16 %v477
    %v877 = vunpack.c.h.b16 %v477
    %v878 = vunpack.c.l.b16 %v478
    %v879 = vunpack.c.h.b16 %v478
    %v880 = vunpack.c.l.b16 %v479
    %v881 = vunpack.c.h.b16 %v479
    %v882 = vunpack.c.l.b16 %v480
    %v883 = vunpack.c.h.b16 %v480
    %v884 = vunpack.c.l.b16 %v481
    %v885 = vunpack.c.h.b16 %v481
    %v886 = vunpack.c.l.b16 %v482
    %v887 = vunpack.c.h.b16 %v482
    %v888 = vunpack.c.l.b16 %v483
    %v889 = vunpack.c.h.b16 %v483
    %v890 = vpack.c.b16 %v638, %v634
    %v891 = vpack.c.b16 %v639, %v635
    %v892 = vpack.c.b16 %v640, %v636
    %v893 = vpack.c.b16 %v641, %v637
    %v894 = vpack.c.b16 %v646, %v642
    %v895 = vpack.c.b16 %v647, %v643
    %v896 = vpack.c.b16 %v648, %v644
    %v897 = vpack.c.b16 %v649, %v645
    %v898 = vpack.c.b16 %v654, %v650
    %v899 = vpack.c.b16 %v655, %v651
    %v900 = vpack.c.b16 %v656, %v652
    %v901 = vpack.c.b16 %v657, %v653
    %v902 = vpack.c.b16 %v662, %v658
    %v903 = vpack.c.b16 %v663, %v659
    %v904 = vpack.c.b16 %v664, %v660
    %v905 = vpack.c.b16 %v665, %v661
    %v906 = vpack.c.b16 %v670, %v666
    %v907 = vpack.c.b16 %v671, %v667
    %v908 = vpack.c.b16 %v672, %v668
    %v909 = vpack.c.b16 %v673, %v669
    %v910 = vpack.c.b16 %v678, %v674
    %v911 = vpack.c.b16 %v679, %v675
    %v912 = vpack.c.b16 %v680, %v676
    %v913 = vpack.c.b16 %v681, %v677
    %v914 = vpack.c.b16 %v686, %v682
    %v915 = vpack.c.b16 %v687, %v683
    %v916 = vpack.c.b16 %v688, %v684
    %v917 = vpack.c.b16 %v689, %v685
    %v918 = vpack.c.b16 %v694, %v690
    %v919 = vpack.c.b16 %v695, %v691
    %v920 = vpack.c.b16 %v696, %v692
    %v921 = vpack.c.b16 %v697, %v693
    %v922 = vpack.c.b16 %v702, %v698
    %v923 = vpack.c.b16 %v703, %v699
    %v924 = vpack.c.b16 %v704, %v700
    %v925 = vpack.c.b16 %v705, %v701
    %v926 = vpack.c.b16 %v710, %v706
    %v927 = vpack.c.b16 %v711, %v707
    %v928 = vpack.c.b16 %v712, %v708
    %v929 = vpack.c.b16 %v713, %v709
    %v930 = vpack.c.b16 %v718, %v714
    %v931 = vpack.c.b16 %v719, %v715
    %v932 = vpack.c.b16 %v720, %v716
    %v933 = vpack.c.b16 %v721, %v717
    %v934 = vpack.c.b16 %v726, %v722
    %v935 = vpack.c.b16 %v727, %v723
    %v936 = vpack.c.b16 %v728, %v724
    %v937 = vpack.c.b16 %v729, %v725
    %v938 = vpack.c.b16 %v734, %v730
    %v939 = vpack.c.b16 %v735, %v731
    %v940 = vpack.c.b16 %v736, %v732
    %v941 = vpack.c.b16 %v737, %v733
    %v942 = vpack.c.b16 %v742, %v738
    %v943 = vpack.c.b16 %v743, %v739
    %v944 = vpack.c.b16 %v744, %v740
    %v945 = vpack.c.b16 %v745, %v741
    %v946 = vpack.c.b16 %v750, %v746
    %v947 = vpack.c.b16 %v751, %v747
    %v948 = vpack.c.b16 %v752, %v748
    %v949 = vpack.c.b16 %v753, %v749
    %v950 = vpack.c.b16 %v758, %v754
    %v951 = vpack.c.b16 %v759, %v755
    %v952 = vpack.c.b16 %v760, %v756
    %v953 = vpack.c.b16 %v761, %v757
    %v954 = vpack.c.b16 %v766, %v762
    %v955 = vpack.c.b16 %v767, %v763
    %v956 = vpack.c.b16 %v768, %v764
    %v957 = vpack.c.b16 %v769, %v765
    %v958 = vpack.c.b16 %v774, %v770
    %v959 = vpack.c.b16 %v775, %v771
    %v960 = vpack.c.b16 %v776, %v772
    %v961 = vpack.c.b16 %v777, %v773
    %v962 = vpack.c.b16 %v782, %v778
    %v963 = vpack.c.b16 %v783, %v779
    %v964 = vpack.c.b16 %v784, %v780
    %v965 = vpack.c.b16 %v785, %v781
    %v966 = vpack.c.b16 %v790, %v786
    %v967 = vpack.c.b16 %v791, %v787
    %v968 = vpack.c.b16 %v792, %v788
    %v969 = vpack.c.b16 %v793, %v789
    %v970 = vpack.c.b16 %v798, %v794
    %v971 = vpack.c.b16 %v799, %v795
    %v972 = vpack.c.b16 %v800, %v796
    %v973 = vpack.c.b16 %v801, %v797
    %v974 = vpack.c.b16 %v806, %v802
    %v975 = vpack.c.b16 %v807, %v803
    %v976 = vpack.c.b16 %v808, %v804
    %v977 = vpack.c.b16 %v809, %v805
    %v978 = vpack.c.b16 %v814, %v810
    %v979 = vpack.c.b16 %v815, %v811
    %v980 = vpack.c.b16 %v816, %v812
    %v981 = vpack.c.b16 %v817, %v813
    %v982 = vpack.c.b16 %v822, %v818
    %v983 = vpack.c.b16 %v823, %v819
    %v984 = vpack.c.b16 %v824, %v820
    %v985 = vpack.c.b16 %v825, %v821
    %v986 = vpack.c.b16 %v830, %v826
    %v987 = vpack.c.b16 %v831, %v827
    %v988 = vpack.c.b16 %v832, %v828
    %v989 = vpack.c.b16 %v833, %v829
    %v990 = vpack.c.b16 %v838, %v834
    %v991 = vpack.c.b16 %v839, %v835
    %v992 = vpack.c.b16 %v840, %v836
    %v993 = vpack.c.b16 %v841, %v837
    %v994 = vpack.c.b16 %v846, %v842
    %v995 = vpack.c.b16 %v847, %v843
    %v996 = vpack.c.b16 %v848, %v844
    %v997 = vpack.c.b16 %v849, %v845
    %v998 = vpack.c.b16 %v854, %v850
    %v999 = vpack.c.b16 %v855, %v851
    %v1000 = vpack.c.b16 %v856, %v852
    %v1001 = vpack.c.b16 %v857, %v853
    %v1002 = vpack.c.b16 %v862, %v858
    %v1003 = vpack.c.b16 %v863, %v859
    %v1004 = vpack.c.b16 %v864, %v860
    %v1005 = vpack.c.b16 %v865, %v861
    %v1006 = vpack.c.b16 %v870, %v866
    %v1007 = vpack.c.b16 %v871, %v867
    %v1008 = vpack.c.b16 %v872, %v868
    %v1009 = vpack.c.b16 %v873, %v869
    %v1010 = vpack.c.b16 %v878, %v874
    %v1011 = vpack.c.b16 %v879, %v875
    %v1012 = vpack.c.b16 %v880, %v876
    %v1013 = vpack.c.b16 %v881, %v877
    %v1014 = vpack.c.b16 %v886, %v882
    %v1015 = vpack.c.b16 %v887, %v883
    %v1016 = vpack.c.b16 %v888, %v884
    %v1017 = vpack.c.b16 %v889, %v885
    %1146 = vmatprep.subr.bf16.mxu0 %v891
    %1147 = vmatpush1.bf16.msra.mxu0 %v890
    %1148 = vmatprep.subr.bf16.mxu0 %v895
    %1149 = vmatpush1.bf16.msra.mxu0 %v894
    %1150 = vmatprep.subr.bf16.mxu0 %v899
    %1151 = vmatpush1.bf16.msra.mxu0 %v898
    %1152 = vmatprep.subr.bf16.mxu0 %v903
    %1153 = vmatpush1.bf16.msra.mxu0 %v902
    %1154 = vmatprep.subr.bf16.mxu0 %v907
    %1155 = vmatpush1.bf16.msra.mxu0 %v906
    %1156 = vmatprep.subr.bf16.mxu0 %v911
    %1157 = vmatpush1.bf16.msra.mxu0 %v910
    %1158 = vmatprep.subr.bf16.mxu0 %v915
    %1159 = vmatpush1.bf16.msra.mxu0 %v914
    %1160 = vmatprep.subr.bf16.mxu0 %v919
    %1161 = vmatpush1.bf16.msra.mxu0 %v918
    %1162 = vmatprep.subr.bf16.mxu0 %v923
    %1163 = vmatpush1.bf16.msra.mxu0 %v922
    %1164 = vmatprep.subr.bf16.mxu0 %v927
    %1165 = vmatpush1.bf16.msra.mxu0 %v926
    %1166 = vmatprep.subr.bf16.mxu0 %v931
    %1167 = vmatpush1.bf16.msra.mxu0 %v930
    %1168 = vmatprep.subr.bf16.mxu0 %v935
    %1169 = vmatpush1.bf16.msra.mxu0 %v934
    %1170 = vmatprep.subr.bf16.mxu0 %v939
    %1171 = vmatpush1.bf16.msra.mxu0 %v938
    %1172 = vmatprep.subr.bf16.mxu0 %v943
    %1173 = vmatpush1.bf16.msra.mxu0 %v942
    %1174 = vmatprep.subr.bf16.mxu0 %v947
    %1175 = vmatpush1.bf16.msra.mxu0 %v946
    %1176 = vmatprep.subr.bf16.mxu0 %v951
    %1177 = vmatpush1.bf16.msra.mxu0 %v950
    %1178 = vmatprep.mubr.bf16.mxu0 %v353
    %1179 = vmatmul.mubr.bf16.gmra.mrb[0].mxu0 %v352
    %v1180 = vpop.f32.mrb[0].mxu0
    %v1181 = vadd.f32 %v489, %v1180
    %v1182 = vpop.f32.mrb[0].mxu0
    %v1183 = vadd.f32 %v493, %v1182
    %v1184 = vpop.f32.mrb[0].mxu0
    %v1185 = vpop.f32.mrb[0].mxu0
    %1186 = vdwg.mxu0
    %1187 = vmatprep.subr.bf16.mxu0 %v955
    %1188 = vmatpush1.bf16.msra.mxu0 %v954
    %1189 = vmatprep.subr.bf16.mxu0 %v959
    %1190 = vmatpush1.bf16.msra.mxu0 %v958
    %1191 = vmatprep.subr.bf16.mxu0 %v963
    %1192 = vmatpush1.bf16.msra.mxu0 %v962
    %1193 = vmatprep.subr.bf16.mxu0 %v967
    %1194 = vmatpush1.bf16.msra.mxu0 %v966
    %1195 = vmatprep.subr.bf16.mxu0 %v971
    %1196 = vmatpush1.bf16.msra.mxu0 %v970
    %1197 = vmatprep.subr.bf16.mxu0 %v975
    %1198 = vmatpush1.bf16.msra.mxu0 %v974
    %1199 = vmatprep.subr.bf16.mxu0 %v979
    %1200 = vmatpush1.bf16.msra.mxu0 %v978
    %1201 = vmatprep.subr.bf16.mxu0 %v983
    %1202 = vmatpush1.bf16.msra.mxu0 %v982
    %1203 = vmatprep.subr.bf16.mxu0 %v987
    %1204 = vmatpush1.bf16.msra.mxu0 %v986
    %1205 = vmatprep.subr.bf16.mxu0 %v991
    %1206 = vmatpush1.bf16.msra.mxu0 %v990
    %1207 = vmatprep.subr.bf16.mxu0 %v995
    %1208 = vmatpush1.bf16.msra.mxu0 %v994
    %1209 = vmatprep.subr.bf16.mxu0 %v999
    %1210 = vmatpush1.bf16.msra.mxu0 %v998
    %1211 = vmatprep.subr.bf16.mxu0 %v1003
    %1212 = vmatpush1.bf16.msra.mxu0 %v1002
    %1213 = vmatprep.subr.bf16.mxu0 %v1007
    %1214 = vmatpush1.bf16.msra.mxu0 %v1006
    %1215 = vmatprep.subr.bf16.mxu0 %v1011
    %1216 = vmatpush1.bf16.msra.mxu0 %v1010
    %1217 = vmatprep.subr.bf16.mxu0 %v1015
    %1218 = vmatpush1.bf16.msra.mxu0 %v1014
    %1219 = vmatprep.mubr.bf16.mxu0 %v355
    %1220 = vmatmul.mubr.bf16.gmra.mrb[0].mxu0 %v354
    %v1221 = vpop.f32.mrb[0].mxu0
    %v1222 = vadd.f32 %v1181, %v1221
    %v1223 = vpop.f32.mrb[0].mxu0
    %v1224 = vadd.f32 %v1183, %v1223
    %v1225 = vpop.f32.mrb[0].mxu0
    %v1226 = vpop.f32.mrb[0].mxu0
    %1227 = vdwg.mxu0
    %1228 = vmatprep.subr.bf16.mxu0 %v893
    %1229 = vmatpush1.bf16.msra.mxu0 %v892
    %1230 = vmatprep.subr.bf16.mxu0 %v897
    %1231 = vmatpush1.bf16.msra.mxu0 %v896
    %1232 = vmatprep.subr.bf16.mxu0 %v901
    %1233 = vmatpush1.bf16.msra.mxu0 %v900
    %1234 = vmatprep.subr.bf16.mxu0 %v905
    %1235 = vmatpush1.bf16.msra.mxu0 %v904
    %1236 = vmatprep.subr.bf16.mxu0 %v909
    %1237 = vmatpush1.bf16.msra.mxu0 %v908
    %1238 = vmatprep.subr.bf16.mxu0 %v913
    %1239 = vmatpush1.bf16.msra.mxu0 %v912
    %1240 = vmatprep.subr.bf16.mxu0 %v917
    %1241 = vmatpush1.bf16.msra.mxu0 %v916
    %1242 = vmatprep.subr.bf16.mxu0 %v921
    %1243 = vmatpush1.bf16.msra.mxu0 %v920
    %1244 = vmatprep.subr.bf16.mxu0 %v925
    %1245 = vmatpush1.bf16.msra.mxu0 %v924
    %1246 = vmatprep.subr.bf16.mxu0 %v929
    %1247 = vmatpush1.bf16.msra.mxu0 %v928
    %1248 = vmatprep.subr.bf16.mxu0 %v933
    %1249 = vmatpush1.bf16.msra.mxu0 %v932
    %1250 = vmatprep.subr.bf16.mxu0 %v937
    %1251 = vmatpush1.bf16.msra.mxu0 %v936
    %1252 = vmatprep.subr.bf16.mxu0 %v941
    %1253 = vmatpush1.bf16.msra.mxu0 %v940
    %1254 = vmatprep.subr.bf16.mxu0 %v945
    %1255 = vmatpush1.bf16.msra.mxu0 %v944
    %1256 = vmatprep.subr.bf16.mxu0 %v949
    %1257 = vmatpush1.bf16.msra.mxu0 %v948
    %1258 = vmatprep.subr.bf16.mxu0 %v953
    %1259 = vmatpush1.bf16.msra.mxu0 %v952
    %1260 = vmatprep.mubr.bf16.mxu0 %v353
    %1261 = vmatmul.mubr.bf16.gmra.mrb[0].mxu0 %v352
    %v1262 = vpop.f32.mrb[0].mxu0
    %v1263 = vadd.f32 %v497, %v1262
    %v1264 = vpop.f32.mrb[0].mxu0
    %v1265 = vadd.f32 %v501, %v1264
    %v1266 = vpop.f32.mrb[0].mxu0
    %v1267 = vpop.f32.mrb[0].mxu0
    %1268 = vdwg.mxu0
    %1269 = vmatprep.subr.bf16.mxu0 %v957
    %1270 = vmatpush1.bf16.msra.mxu0 %v956
    %1271 = vmatprep.subr.bf16.mxu0 %v961
    %1272 = vmatpush1.bf16.msra.mxu0 %v960
    %1273 = vmatprep.subr.bf16.mxu0 %v965
    %1274 = vmatpush1.bf16.msra.mxu0 %v964
    %1275 = vmatprep.subr.bf16.mxu0 %v969
    %1276 = vmatpush1.bf16.msra.mxu0 %v968
    %1277 = vmatprep.subr.bf16.mxu0 %v973
    %1278 = vmatpush1.bf16.msra.mxu0 %v972
    %1279 = vmatprep.subr.bf16.mxu0 %v977
    %1280 = vmatpush1.bf16.msra.mxu0 %v976
    %1281 = vmatprep.subr.bf16.mxu0 %v981
    %1282 = vmatpush1.bf16.msra.mxu0 %v980
    %1283 = vmatprep.subr.bf16.mxu0 %v985
    %1284 = vmatpush1.bf16.msra.mxu0 %v984
    %1285 = vmatprep.subr.bf16.mxu0 %v989
    %1286 = vmatpush1.bf16.msra.mxu0 %v988
    %1287 = vmatprep.subr.bf16.mxu0 %v993
    %1288 = vmatpush1.bf16.msra.mxu0 %v992
    %1289 = vmatprep.subr.bf16.mxu0 %v997
    %1290 = vmatpush1.bf16.msra.mxu0 %v996
    %1291 = vmatprep.subr.bf16.mxu0 %v1001
    %1292 = vmatpush1.bf16.msra.mxu0 %v1000
    %1293 = vmatprep.subr.bf16.mxu0 %v1005
    %1294 = vmatpush1.bf16.msra.mxu0 %v1004
    %1295 = vmatprep.subr.bf16.mxu0 %v1009
    %1296 = vmatpush1.bf16.msra.mxu0 %v1008
    %1297 = vmatprep.subr.bf16.mxu0 %v1013
    %1298 = vmatpush1.bf16.msra.mxu0 %v1012
    %1299 = vmatprep.subr.bf16.mxu0 %v1017
    %1300 = vmatpush1.bf16.msra.mxu0 %v1016
    %1301 = vmatprep.mubr.bf16.mxu0 %v355
    %1302 = vmatmul.mubr.bf16.gmra.mrb[0].mxu0 %v354
    %v1303 = vpop.f32.mrb[0].mxu0
    %v1304 = vadd.f32 %v1263, %v1303
    %v1305 = vpop.f32.mrb[0].mxu0
    %v1306 = vadd.f32 %v1265, %v1305
    %v1307 = vpop.f32.mrb[0].mxu0
    %v1308 = vpop.f32.mrb[0].mxu0
    %1309 = vdwg.mxu0
    %v1310 = vmax.f32 %v1222, 0.0
    %v1311 = vmax.f32 %v1224, 0.0
    %v1312 = vmax.f32 %v1304, 0.0
    %v1313 = vmax.f32 %v1306, 0.0
    %v1314 = vpack.c.bf16 %v1310, %v1310
    %v1315 = vpack.c.bf16 %v1311, %v1311
    %v1316 = vpack.c.bf16 %v1312, %v1312
    %v1317 = vpack.c.bf16 %v1313, %v1313
    %v1318 = vld [vmem:[#allocation9] sm:$0xf]
    %v1319 = vld [vmem:[#allocation9 + $0x4] sm:$0xf]
    %v1320 = vld [vmem:[#allocation9 + $0x8] sm:$0xf]
    %v1321 = vld [vmem:[#allocation9 + $0xc] sm:$0xf]
    %v1322 = vld [vmem:[#allocation9 + $0x10] sm:$0xf]
    %v1323 = vld [vmem:[#allocation9 + $0x14] sm:$0xf]
    %v1324 = vld [vmem:[#allocation9 + $0x18] sm:$0xf]
    %v1325 = vld [vmem:[#allocation9 + $0x1c] sm:$0xf]
    %v1326 = vld [vmem:[#allocation9 + $0x20] sm:$0xf]
    %v1327 = vld [vmem:[#allocation9 + $0x24] sm:$0xf]
    %v1328 = vld [vmem:[#allocation9 + $0x28] sm:$0xf]
    %v1329 = vld [vmem:[#allocation9 + $0x2c] sm:$0xf]
    %v1330 = vld [vmem:[#allocation9 + $0x30] sm:$0xf]
    %v1331 = vld [vmem:[#allocation9 + $0x34] sm:$0xf]
    %v1332 = vld [vmem:[#allocation9 + $0x38] sm:$0xf]
    %v1333 = vld [vmem:[#allocation9 + $0x3c] sm:$0xf]
    %v1334 = vld [vmem:[#allocation9 + $0x40] sm:$0xf]
    %v1335 = vld [vmem:[#allocation9 + $0x44] sm:$0xf]
    %v1336 = vld [vmem:[#allocation9 + $0x48] sm:$0xf]
    %v1337 = vld [vmem:[#allocation9 + $0x4c] sm:$0xf]
    %v1338 = vld [vmem:[#allocation9 + $0x50] sm:$0xf]
    %v1339 = vld [vmem:[#allocation9 + $0x54] sm:$0xf]
    %v1340 = vld [vmem:[#allocation9 + $0x58] sm:$0xf]
    %v1341 = vld [vmem:[#allocation9 + $0x5c] sm:$0xf]
    %v1342 = vld [vmem:[#allocation9 + $0x60] sm:$0xf]
    %v1343 = vld [vmem:[#allocation9 + $0x64] sm:$0xf]
    %v1344 = vld [vmem:[#allocation9 + $0x68] sm:$0xf]
    %v1345 = vld [vmem:[#allocation9 + $0x6c] sm:$0xf]
    %v1346 = vld [vmem:[#allocation9 + $0x70] sm:$0xf]
    %v1347 = vld [vmem:[#allocation9 + $0x74] sm:$0xf]
    %v1348 = vld [vmem:[#allocation9 + $0x78] sm:$0xf]
    %v1349 = vld [vmem:[#allocation9 + $0x7c] sm:$0xf]
    %v1350 = vld [vmem:[#allocation9 + $0x80] sm:$0xf]
    %v1351 = vld [vmem:[#allocation9 + $0x84] sm:$0xf]
    %v1352 = vld [vmem:[#allocation9 + $0x88] sm:$0xf]
    %v1353 = vld [vmem:[#allocation9 + $0x8c] sm:$0xf]
    %v1354 = vld [vmem:[#allocation9 + $0x90] sm:$0xf]
    %v1355 = vld [vmem:[#allocation9 + $0x94] sm:$0xf]
    %v1356 = vld [vmem:[#allocation9 + $0x98] sm:$0xf]
    %v1357 = vld [vmem:[#allocation9 + $0x9c] sm:$0xf]
    %v1358 = vld [vmem:[#allocation9 + $0xa0] sm:$0xf]
    %v1359 = vld [vmem:[#allocation9 + $0xa4] sm:$0xf]
    %v1360 = vld [vmem:[#allocation9 + $0xa8] sm:$0xf]
    %v1361 = vld [vmem:[#allocation9 + $0xac] sm:$0xf]
    %v1362 = vld [vmem:[#allocation9 + $0xb0] sm:$0xf]
    %v1363 = vld [vmem:[#allocation9 + $0xb4] sm:$0xf]
    %v1364 = vld [vmem:[#allocation9 + $0xb8] sm:$0xf]
    %v1365 = vld [vmem:[#allocation9 + $0xbc] sm:$0xf]
    %v1366 = vld [vmem:[#allocation9 + $0xc0] sm:$0xf]
    %v1367 = vld [vmem:[#allocation9 + $0xc4] sm:$0xf]
    %v1368 = vld [vmem:[#allocation9 + $0xc8] sm:$0xf]
    %v1369 = vld [vmem:[#allocation9 + $0xcc] sm:$0xf]
    %v1370 = vld [vmem:[#allocation9 + $0xd0] sm:$0xf]
    %v1371 = vld [vmem:[#allocation9 + $0xd4] sm:$0xf]
    %v1372 = vld [vmem:[#allocation9 + $0xd8] sm:$0xf]
    %v1373 = vld [vmem:[#allocation9 + $0xdc] sm:$0xf]
    %v1374 = vld [vmem:[#allocation9 + $0xe0] sm:$0xf]
    %v1375 = vld [vmem:[#allocation9 + $0xe4] sm:$0xf]
    %v1376 = vld [vmem:[#allocation9 + $0xe8] sm:$0xf]
    %v1377 = vld [vmem:[#allocation9 + $0xec] sm:$0xf]
    %v1378 = vld [vmem:[#allocation9 + $0xf0] sm:$0xf]
    %v1379 = vld [vmem:[#allocation9 + $0xf4] sm:$0xf]
    %v1380 = vld [vmem:[#allocation9 + $0xf8] sm:$0xf]
    %v1381 = vld [vmem:[#allocation9 + $0xfc] sm:$0xf]
    %v1382 = vld [vmem:[%s8] sm:$0x1]
    %v1384 = vlaneseq
    %v1385 = vshrl.u32 %v1384, 7
    %v1386 = vsub.s32 0, %v1385
    %v1387 = vrot.slane %v1382, %v1386
    %v1453 = vunpack.c.l.b16 %v1318
    %v1454 = vunpack.c.l.b16 %v1319
    %v1455 = vunpack.c.l.b16 %v1320
    %v1456 = vunpack.c.l.b16 %v1321
    %v1457 = vunpack.c.l.b16 %v1322
    %v1458 = vunpack.c.l.b16 %v1323
    %v1459 = vunpack.c.l.b16 %v1324
    %v1460 = vunpack.c.l.b16 %v1325
    %v1461 = vunpack.c.l.b16 %v1326
    %v1462 = vunpack.c.l.b16 %v1327
    %v1463 = vunpack.c.l.b16 %v1328
    %v1464 = vunpack.c.l.b16 %v1329
    %v1465 = vunpack.c.l.b16 %v1330
    %v1466 = vunpack.c.l.b16 %v1331
    %v1467 = vunpack.c.l.b16 %v1332
    %v1468 = vunpack.c.l.b16 %v1333
    %v1469 = vunpack.c.l.b16 %v1334
    %v1470 = vunpack.c.l.b16 %v1335
    %v1471 = vunpack.c.l.b16 %v1336
    %v1472 = vunpack.c.l.b16 %v1337
    %v1473 = vunpack.c.l.b16 %v1338
    %v1474 = vunpack.c.l.b16 %v1339
    %v1475 = vunpack.c.l.b16 %v1340
    %v1476 = vunpack.c.l.b16 %v1341
    %v1477 = vunpack.c.l.b16 %v1342
    %v1478 = vunpack.c.l.b16 %v1343
    %v1479 = vunpack.c.l.b16 %v1344
    %v1480 = vunpack.c.l.b16 %v1345
    %v1481 = vunpack.c.l.b16 %v1346
    %v1482 = vunpack.c.l.b16 %v1347
    %v1483 = vunpack.c.l.b16 %v1348
    %v1484 = vunpack.c.l.b16 %v1349
    %v1485 = vunpack.c.l.b16 %v1350
    %v1486 = vunpack.c.l.b16 %v1351
    %v1487 = vunpack.c.l.b16 %v1352
    %v1488 = vunpack.c.l.b16 %v1353
    %v1489 = vunpack.c.l.b16 %v1354
    %v1490 = vunpack.c.l.b16 %v1355
    %v1491 = vunpack.c.l.b16 %v1356
    %v1492 = vunpack.c.l.b16 %v1357
    %v1493 = vunpack.c.l.b16 %v1358
    %v1494 = vunpack.c.l.b16 %v1359
    %v1495 = vunpack.c.l.b16 %v1360
    %v1496 = vunpack.c.l.b16 %v1361
    %v1497 = vunpack.c.l.b16 %v1362
    %v1498 = vunpack.c.l.b16 %v1363
    %v1499 = vunpack.c.l.b16 %v1364
    %v1500 = vunpack.c.l.b16 %v1365
    %v1501 = vunpack.c.l.b16 %v1366
    %v1502 = vunpack.c.l.b16 %v1367
    %v1503 = vunpack.c.l.b16 %v1368
    %v1504 = vunpack.c.l.b16 %v1369
    %v1505 = vunpack.c.l.b16 %v1370
    %v1506 = vunpack.c.l.b16 %v1371
    %v1507 = vunpack.c.l.b16 %v1372
    %v1508 = vunpack.c.l.b16 %v1373
    %v1509 = vunpack.c.l.b16 %v1374
    %v1510 = vunpack.c.l.b16 %v1375
    %v1511 = vunpack.c.l.b16 %v1376
    %v1512 = vunpack.c.l.b16 %v1377
    %v1513 = vunpack.c.l.b16 %v1378
    %v1514 = vunpack.c.l.b16 %v1379
    %v1515 = vunpack.c.l.b16 %v1380
    %v1516 = vunpack.c.l.b16 %v1381
    %v1517 = vpack.c.b16 %v1454, %v1453
    %v1518 = vpack.c.b16 %v1456, %v1455
    %v1519 = vpack.c.b16 %v1458, %v1457
    %v1520 = vpack.c.b16 %v1460, %v1459
    %v1521 = vpack.c.b16 %v1462, %v1461
    %v1522 = vpack.c.b16 %v1464, %v1463
    %v1523 = vpack.c.b16 %v1466, %v1465
    %v1524 = vpack.c.b16 %v1468, %v1467
    %v1525 = vpack.c.b16 %v1470, %v1469
    %v1526 = vpack.c.b16 %v1472, %v1471
    %v1527 = vpack.c.b16 %v1474, %v1473
    %v1528 = vpack.c.b16 %v1476, %v1475
    %v1529 = vpack.c.b16 %v1478, %v1477
    %v1530 = vpack.c.b16 %v1480, %v1479
    %v1531 = vpack.c.b16 %v1482, %v1481
    %v1532 = vpack.c.b16 %v1484, %v1483
    %v1533 = vpack.c.b16 %v1486, %v1485
    %v1534 = vpack.c.b16 %v1488, %v1487
    %v1535 = vpack.c.b16 %v1490, %v1489
    %v1536 = vpack.c.b16 %v1492, %v1491
    %v1537 = vpack.c.b16 %v1494, %v1493
    %v1538 = vpack.c.b16 %v1496, %v1495
    %v1539 = vpack.c.b16 %v1498, %v1497
    %v1540 = vpack.c.b16 %v1500, %v1499
    %v1541 = vpack.c.b16 %v1502, %v1501
    %v1542 = vpack.c.b16 %v1504, %v1503
    %v1543 = vpack.c.b16 %v1506, %v1505
    %v1544 = vpack.c.b16 %v1508, %v1507
    %v1545 = vpack.c.b16 %v1510, %v1509
    %v1546 = vpack.c.b16 %v1512, %v1511
    %v1547 = vpack.c.b16 %v1514, %v1513
    %v1548 = vpack.c.b16 %v1516, %v1515
    %1581 = vmatprep.subr.bf16.mxu0 0
    %1582 = vmatpush1.bf16.msra.mxu0 %v1517
    %1583 = vmatprep.subr.bf16.mxu0 0
    %1584 = vmatpush1.bf16.msra.mxu0 %v1518
    %1585 = vmatprep.subr.bf16.mxu0 0
    %1586 = vmatpush1.bf16.msra.mxu0 %v1519
    %1587 = vmatprep.subr.bf16.mxu0 0
    %1588 = vmatpush1.bf16.msra.mxu0 %v1520
    %1589 = vmatprep.subr.bf16.mxu0 0
    %1590 = vmatpush1.bf16.msra.mxu0 %v1521
    %1591 = vmatprep.subr.bf16.mxu0 0
    %1592 = vmatpush1.bf16.msra.mxu0 %v1522
    %1593 = vmatprep.subr.bf16.mxu0 0
    %1594 = vmatpush1.bf16.msra.mxu0 %v1523
    %1595 = vmatprep.subr.bf16.mxu0 0
    %1596 = vmatpush1.bf16.msra.mxu0 %v1524
    %1597 = vmatprep.subr.bf16.mxu0 0
    %1598 = vmatpush1.bf16.msra.mxu0 %v1525
    %1599 = vmatprep.subr.bf16.mxu0 0
    %1600 = vmatpush1.bf16.msra.mxu0 %v1526
    %1601 = vmatprep.subr.bf16.mxu0 0
    %1602 = vmatpush1.bf16.msra.mxu0 %v1527
    %1603 = vmatprep.subr.bf16.mxu0 0
    %1604 = vmatpush1.bf16.msra.mxu0 %v1528
    %1605 = vmatprep.subr.bf16.mxu0 0
    %1606 = vmatpush1.bf16.msra.mxu0 %v1529
    %1607 = vmatprep.subr.bf16.mxu0 0
    %1608 = vmatpush1.bf16.msra.mxu0 %v1530
    %1609 = vmatprep.subr.bf16.mxu0 0
    %1610 = vmatpush1.bf16.msra.mxu0 %v1531
    %1611 = vmatprep.subr.bf16.mxu0 0
    %1612 = vmatpush1.bf16.msra.mxu0 %v1532
    %1613 = vmatprep.mubr.bf16.mxu0 %v1315
    %1614 = vmatmul.mubr.bf16.gmra.mrb[0].mxu0 %v1314
    %v1615 = vpop.f32.mrb[0].mxu0
    %v1616 = vadd.f32 %v1387, %v1615
    %v1617 = vpop.f32.mrb[0].mxu0
    %v1618 = vpop.f32.mrb[0].mxu0
    %v1619 = vpop.f32.mrb[0].mxu0
    %1620 = vdwg.mxu0
    %1621 = vmatprep.subr.bf16.mxu0 0
    %1622 = vmatpush1.bf16.msra.mxu0 %v1533
    %1623 = vmatprep.subr.bf16.mxu0 0
    %1624 = vmatpush1.bf16.msra.mxu0 %v1534
    %1625 = vmatprep.subr.bf16.mxu0 0
    %1626 = vmatpush1.bf16.msra.mxu0 %v1535
    %1627 = vmatprep.subr.bf16.mxu0 0
    %1628 = vmatpush1.bf16.msra.mxu0 %v1536
    %1629 = vmatprep.subr.bf16.mxu0 0
    %1630 = vmatpush1.bf16.msra.mxu0 %v1537
    %1631 = vmatprep.subr.bf16.mxu0 0
    %1632 = vmatpush1.bf16.msra.mxu0 %v1538
    %1633 = vmatprep.subr.bf16.mxu0 0
    %1634 = vmatpush1.bf16.msra.mxu0 %v1539
    %1635 = vmatprep.subr.bf16.mxu0 0
    %1636 = vmatpush1.bf16.msra.mxu0 %v1540
    %1637 = vmatprep.subr.bf16.mxu0 0
    %1638 = vmatpush1.bf16.msra.mxu0 %v1541
    %1639 = vmatprep.subr.bf16.mxu0 0
    %1640 = vmatpush1.bf16.msra.mxu0 %v1542
    %1641 = vmatprep.subr.bf16.mxu0 0
    %1642 = vmatpush1.bf16.msra.mxu0 %v1543
    %1643 = vmatprep.subr.bf16.mxu0 0
    %1644 = vmatpush1.bf16.msra.mxu0 %v1544
    %1645 = vmatprep.subr.bf16.mxu0 0
    %1646 = vmatpush1.bf16.msra.mxu0 %v1545
    %1647 = vmatprep.subr.bf16.mxu0 0
    %1648 = vmatpush1.bf16.msra.mxu0 %v1546
    %1649 = vmatprep.subr.bf16.mxu0 0
    %1650 = vmatpush1.bf16.msra.mxu0 %v1547
    %1651 = vmatprep.subr.bf16.mxu0 0
    %1652 = vmatpush1.bf16.msra.mxu0 %v1548
    %1653 = vmatprep.mubr.bf16.mxu0 %v1317
    %1654 = vmatmul.mubr.bf16.gmra.mrb[0].mxu0 %v1316
    %v1655 = vpop.f32.mrb[0].mxu0
    %v1656 = vadd.f32 %v1616, %v1655
    %v1657 = vpop.f32.mrb[0].mxu0
    %v1658 = vpop.f32.mrb[0].mxu0
    %v1659 = vpop.f32.mrb[0].mxu0
    %1660 = vdwg.mxu0
    %v1661 = vpack.c.bf16 %v1656, %v1656
    %1662 = vst [vmem:[%s9] sm:$0x1] %v1661
    // Predicated region
    $region58: #{policy_forward.1} parent=1 // pred_check
      _
    $region59: #{policy_forward.1} parent=1 // pred_check_branch
      %1664 = sbr.rel (0) target = $region61
    $region60: #{policy_forward.1} parent=1 // pred_region
      _
    $region61: #{policy_forward.1} parent=1 // pred_fallthru
      _
    // Predicated region
    $region62: #{policy_forward.1} parent=1 // pred_check
      _
    $region63: #{policy_forward.1} parent=1 // pred_check_branch
      %1666 = sbr.rel (0) target = $region65
    $region64: #{policy_forward.1} parent=1 // pred_region
      _
    $region65: #{policy_forward.1} parent=1 // pred_fallthru
      _
    %1667 = vsyncpa [#allocation3], 1
    %1668 = vsyncpa [#allocation5], 1
    %1669 = vsyncpa [#allocation8], 1

</llo_original>
